<compile_context>
chip_gen: v5e
topology: v5e:2x2
jax: 0.10.0
libtpu: 0.0.40
codegen_flags: <defaults>
</compile_context>

<pallas_src>
import functools

import jax
import jax.numpy as jnp
from jax import lax
from jax.experimental import pallas as pl
from jax.experimental.pallas import tpu as pltpu


def _round_up(x, m):
    return (x + m - 1) // m * m


def _divisors(n):
    return [k for k in range(1, n + 1) if n % k == 0]


def _vmem_capacity_bytes():
    try:
        return int(pltpu.get_tpu_info().vmem_capacity_bytes)
    except Exception:
        return 64 * 1024 * 1024  # v7x-safe fallback


def _estimate_vmem(TH, W, Wp, d, Cin_p, Cmid_p, Cout_p):
    TH2d = TH + 2 * d
    xbuf = 2 * TH2d * W * Cin_p * 2            # double-buffered bf16 input slab
    mid = TH2d * Wp * Cmid_p * 2               # rolling bf16 intermediate
    cat = TH2d * W * 3 * Cmid_p * 2            # concatenated kx taps (bf16)
    mid32 = TH2d * W * Cmid_p * 4              # stage-1 f32 result in flight
    acc32 = TH * W * Cout_p * 4                # stage-2 f32 accumulator
    outbuf = 2 * TH * W * Cout_p * 2           # double-buffered bf16 out block
    return xbuf + mid + cat + mid32 + acc32 + outbuf


def _pick_row_tile(H, W, d, Cin_p, Cmid_p, Cout_p, weight_bytes, vmem_cap,
                   max_row_tile=None):
    """Largest row tile (divisor of H, >= 2*d for the halo carry) that fits the
    per-generation VMEM budget; prefer >= 2 tiles so the DMA pipeline overlaps."""
    wpad_l = _round_up(d, 8)
    Wp = _round_up(wpad_l + W + d, 8)
    budget = int(vmem_cap * 0.55) - 2 * weight_bytes
    best = None
    for TH in _divisors(H):
        if max_row_tile is not None and TH > max_row_tile:
            continue
        if TH < 2 * d and TH != H:     # carry shift requires TH >= 2*d
            continue
        if _estimate_vmem(TH, W, Wp, d, Cin_p, Cmid_p, Cout_p) > budget:
            continue
        key = (H // TH >= 2, TH)
        if best is None or key > best[0]:
            best = (key, TH)
    if best is not None:
        return best[1]
    cands = [t for t in _divisors(H) if t >= 2 * d]
    return min(cands) if cands else H


# ----------------------------------------------------------------------------
# Fused kernel: 1x1 conv(+BN folded) + ReLU  ->  dilated 3x3 conv(+BN) + ReLU
# One grid step = one (batch, row-tile) output block of shape (TH, W, Cout_p).
# ----------------------------------------------------------------------------
def _fused_daspp_kernel(x_hbm, w1_ref, b1_ref, w2_ref, b2_ref, o_ref,
                        xbuf, sem, mid_ref, *, TH, H, W, d, wpad_l, Cmid_p):
    n = pl.program_id(0)
    i = pl.program_id(1)
    nI = pl.num_programs(1)
    TH2d = TH + 2 * d
    Wp = mid_ref.shape[1]
    slot = lax.rem(i, 2)

    # ---- DMA: per-batch prime + intra-batch prefetch ------------------------
    @pl.when(i == 0)
    def _():
        # First tile of this batch element: full (TH + 2d)-row slab; it also
        # produces the 2d-row halo that later tiles will carry forward.
        pltpu.make_async_copy(x_hbm.at[n, pl.ds(0, TH2d)],
                              xbuf.at[0], sem.at[0]).start()
        # W-halo columns of the rolling intermediate stay zero forever; zero
        # only them (not the whole buffer).
        mid_ref[:, 0:wpad_l, :] = jnp.zeros((TH2d, wpad_l, Cmid_p), mid_ref.dtype)
        if Wp > wpad_l + W:
            mid_ref[:, wpad_l + W:, :] = jnp.zeros(
                (TH2d, Wp - wpad_l - W, Cmid_p), mid_ref.dtype)

    @pl.when(i + 1 < nI)
    def _():
        # Interior tiles only need the TH NEW rows (the 2d halo is carried).
        nslot = 1 - slot
        pltpu.make_async_copy(
            x_hbm.at[n, pl.ds((i + 1) * TH + 2 * d, TH)],
            xbuf.at[nslot, pl.ds(0, TH)], sem.at[nslot]).start()

    # ---- wait for this tile's slab ------------------------------------------
    @pl.when(i == 0)
    def _():
        pltpu.make_async_copy(x_hbm.at[n, pl.ds(0, TH2d)],
                              xbuf.at[0], sem.at[0]).wait()

    @pl.when(i > 0)
    def _():
        pltpu.make_async_copy(x_hbm.at[n, pl.ds(i * TH + 2 * d, TH)],
                              xbuf.at[slot, pl.ds(0, TH)], sem.at[slot]).wait()

    # ---- stage 1: 1x1 conv (BN scale folded into w1) + bias + ReLU ----------
    def stage1(xslab):
        m = lax.dot_general(xslab, w1_ref[...], (((2,), (0,)), ((), ())),
                            preferred_element_type=jnp.float32)
        return jnp.maximum(m + b1_ref[...], 0.0).astype(mid_ref.dtype)

    @pl.when(i == 0)
    def _():
        # Whole slab, then overwrite the d top zero-padding rows (stage-1 of a
        # zero input row is relu(b1), NOT zero).
        mid_ref[:, wpad_l:wpad_l + W, :] = stage1(xbuf[0])
        mid_ref[0:d, :, :] = jnp.zeros((d, Wp, Cmid_p), mid_ref.dtype)

    @pl.when(i > 0)
    def _():
        # Carry: previous tile's bottom 2d rows become this tile's top 2d rows
        # (regions are disjoint because TH >= 2d), then compute only TH rows.
        mid_ref[0:2 * d, :, :] = mid_ref[TH:TH + 2 * d, :, :]
        mid_ref[2 * d:, wpad_l:wpad_l + W, :] = stage1(xbuf[slot, pl.ds(0, TH)])

    @pl.when(i == nI - 1)
    def _():
        # Bottom d zero-padding rows of the image.
        mid_ref[TH + d:, :, :] = jnp.zeros((d, Wp, Cmid_p), mid_ref.dtype)

    # ---- stage 2: dilated 3x3 conv (BN folded into w2) + bias + ReLU --------
    # Hoist the kx (W-axis) shifts out of the ky loop: 3 shifted views,
    # concatenated along the contraction axis -> 3 MXU dots with K = 3*Cmid_p
    # (w2 was pre-reshaped to (3, 3*Cmid_p, Cout_p) in the wrapper).
    mid_all = mid_ref[...]                                  # (TH2d, Wp, Cmid_p)
    taps = [mid_all[:, wpad_l - d + kx * d: wpad_l - d + kx * d + W, :]
            for kx in range(3)]
    cat = jnp.concatenate(taps, axis=-1)                    # (TH2d, W, 3*Cmid_p)
    Cout_p = o_ref.shape[-1]
    acc = jnp.zeros((TH, W, Cout_p), jnp.float32)
    for ky in range(3):                                     # row slices are free
        acc = acc + lax.dot_general(
            cat[ky * d:ky * d + TH], w2_ref[ky],
            (((2,), (0,)), ((), ())), preferred_element_type=jnp.float32)
    o_ref[0] = jnp.maximum(acc + b2_ref[...], 0.0).astype(o_ref.dtype)


# ----------------------------------------------------------------------------
# Module wrapper (NCHW in / NCHW out, like the PyTorch module)
# ----------------------------------------------------------------------------
def daspp_conv_branch(x_nchw, params, dilation, *, max_row_tile=None,
                      nchw_output=True):
    N, Cin, H, W = x_nchw.shape
    Cmid = params["w1"].shape[1]
    Cout = params["w2"].shape[3]
    d = int(dilation)
    assert d >= 1

    Cin_p = _round_up(Cin, 128)
    Cmid_p = _round_up(Cmid, 128)
    Cout_p = _round_up(Cout, 128)

    wpad_l = _round_up(d, 8)                    # sublane-aligned left W-halo
    Wp = _round_up(wpad_l + W + d, 8)

    vmem_cap = _vmem_capacity_bytes()
    weight_bytes = (Cin_p * Cmid_p + 9 * Cmid_p * Cout_p) * 2
    TH = _pick_row_tile(H, W, d, Cin_p, Cmid_p, Cout_p, weight_bytes, vmem_cap,
                        max_row_tile)
    nI = H // TH
    TH2d = TH + 2 * d
    vmem_limit = max(int(vmem_cap * 0.75), 32 * 1024 * 1024)

    # NCHW -> NHWC, zero-pad the H halo + channel axis (128-lane), cast bf16.
    x = jnp.transpose(x_nchw, (0, 2, 3, 1))
    x = jnp.pad(x, ((0, 0), (d, d), (0, 0), (0, Cin_p - Cin))).astype(jnp.bfloat16)

    # Fold the BN scale into the conv weights (per output channel); only the
    # bias add remains in-kernel.
    w1 = params["w1"] * params["s1"][0][None, :]
    w2 = params["w2"] * params["s2"][0]
    b1 = jnp.pad(params["b1"], ((0, 0), (0, Cmid_p - Cmid)))
    b2 = jnp.pad(params["b2"], ((0, 0), (0, Cout_p - Cout)))
    w1 = jnp.pad(w1, ((0, Cin_p - Cin), (0, Cmid_p - Cmid))).astype(jnp.bfloat16)
    w2 = jnp.pad(w2, ((0, 0), (0, 0), (0, Cmid_p - Cmid),
                      (0, Cout_p - Cout))).astype(jnp.bfloat16)
    # (ky, kx, Cmid_p, Cout_p) -> (ky, 3*Cmid_p, Cout_p): kx taps concatenated
    # along the contraction axis (matches the in-kernel tap concat order).
    w2cat = w2.reshape(3, 3 * Cmid_p, Cout_p)

    kernel = functools.partial(_fused_daspp_kernel, TH=TH, H=H, W=W, d=d,
                               wpad_l=wpad_l, Cmid_p=Cmid_p)

    out = pl.pallas_call(
        kernel,
        out_shape=jax.ShapeDtypeStruct((N, H, W, Cout_p), jnp.bfloat16),
        grid_spec=pltpu.PrefetchScalarGridSpec(
            num_scalar_prefetch=0,
            grid=(N, nI),
            in_specs=[
                pl.BlockSpec(memory_space=pl.ANY),                        # x (HBM)
                pl.BlockSpec((Cin_p, Cmid_p), lambda n, i: (0, 0)),       # w1
                pl.BlockSpec((1, Cmid_p), lambda n, i: (0, 0)),           # b1
                pl.BlockSpec((3, 3 * Cmid_p, Cout_p), lambda n, i: (0, 0, 0)),  # w2cat
                pl.BlockSpec((1, Cout_p), lambda n, i: (0, 0)),           # b2
            ],
            out_specs=pl.BlockSpec((1, TH, W, Cout_p), lambda n, i: (n, i, 0, 0)),
            scratch_shapes=[
                pltpu.VMEM((2, TH2d, W, Cin_p), jnp.bfloat16),  # dbl-buf input slab
                pltpu.SemaphoreType.DMA((2,)),
                pltpu.VMEM((TH2d, Wp, Cmid_p), jnp.bfloat16),   # rolling intermediate
            ],
        ),
        compiler_params=pltpu.CompilerParams(
            dimension_semantics=("parallel", "arbitrary"),
            vmem_limit_bytes=vmem_limit,
        ),
    )(x, w1, b1, w2cat, b2)

    if not nchw_output:
        return out                               # NHWC, channel-padded, bf16
    out = out[..., :Cout].astype(jnp.float32)    # strip channel padding
    return jnp.transpose(out, (0, 3, 1, 2))      # NHWC -> NCHW


# ----------------------------------------------------------------------------
# Parameter init (BN folded to inference-time scale/shift) + pure-JAX reference
# ----------------------------------------------------------------------------
# TODO(synk): training-mode BatchNorm (running-stat updates) is not modeled;
# only the inference-time affine fold of BN is implemented.
def init_params(key, in_channel, out_channel, inter_channel):
    ks = jax.random.split(key, 10)

    def fold_bn(gamma, beta, mean, var, eps=1e-5):
        scale = gamma / jnp.sqrt(var + eps)
        shift = beta - mean * scale
        return scale[None, :], shift[None, :]

    # conv1: 1x1, weight stored (Cin, Cmid)
    w1 = jax.random.normal(ks[0], (in_channel, inter_channel), jnp.float32)
    w1 = w1 * (2.0 / in_channel) ** 0.5
    g1 = 1.0 + 0.1 * jax.random.normal(ks[1], (inter_channel,), jnp.float32)
    be1 = 0.1 * jax.random.normal(ks[2], (inter_channel,), jnp.float32)
    m1 = 0.1 * jax.random.normal(ks[3], (inter_channel,), jnp.float32)
    v1 = jax.random.uniform(ks[4], (inter_channel,), jnp.float32, 0.5, 1.5)
    s1, b1 = fold_bn(g1, be1, m1, v1)

    # conv2: 3x3 dilated, weight stored HWIO (3, 3, Cmid, Cout)
    fan_in = 9 * inter_channel
    w2 = jax.random.normal(ks[5], (3, 3, inter_channel, out_channel), jnp.float32)
    w2 = w2 * (2.0 / fan_in) ** 0.5
    g2 = 1.0 + 0.1 * jax.random.normal(ks[6], (out_channel,), jnp.float32)
    be2 = 0.1 * jax.random.normal(ks[7], (out_channel,), jnp.float32)
    m2 = 0.1 * jax.random.normal(ks[8], (out_channel,), jnp.float32)
    v2 = jax.random.uniform(ks[9], (out_channel,), jnp.float32, 0.5, 1.5)
    s2, b2 = fold_bn(g2, be2, m2, v2)

    return {"w1": w1, "s1": s1, "b1": b1, "w2": w2, "s2": s2, "b2": b2}


def ref_forward(x_nchw, params, dilation):
    x = jnp.transpose(x_nchw, (0, 2, 3, 1))
    y = jnp.einsum("nhwc,co->nhwo", x, params["w1"])
    y = jnp.maximum(y * params["s1"] + params["b1"], 0.0)
    y = lax.conv_general_dilated(
        y, params["w2"], window_strides=(1, 1),
        padding=[(dilation, dilation), (dilation, dilation)],
        rhs_dilation=(dilation, dilation),
        dimension_numbers=("NHWC", "HWIO", "NHWC"))
    y = jnp.maximum(y * params["s2"] + params["b2"], 0.0)
    return jnp.transpose(y, (0, 3, 1, 2))


if __name__ == "__main__":
    key = jax.random.PRNGKey(0)
    kx_, kp = jax.random.split(key)

    # Small shapes consistent with the module: inter_channel = in_channel // 2.
    N, Cin, H, W = 2, 8, 24, 16
    Cout = 8
    Cmid = Cin // 2

    x = jax.random.normal(kx_, (N, Cin, H, W), jnp.float32)
    params = init_params(kp, Cin, Cout, Cmid)

    configs = [
        # (dilation, max_row_tile): small row tiles exercise the rolling-halo
        # carry (first / interior / last tiles) and odd dilations exercise the
        # sublane-alignment padding of the intermediate.
        (1, 8), (2, 8), (3, 8),
        # default budget-driven tile choice
        (2, None),
    ]
    for dil, mrt in configs:
        fwd = jax.jit(functools.partial(daspp_conv_branch, dilation=dil,
                                        max_row_tile=mrt))
        out = jax.block_until_ready(fwd(x, params))
        ref = jax.block_until_ready(ref_forward(x, params, dil))
        assert out.shape == (N, Cout, H, W), out.shape
        max_err = float(jnp.max(jnp.abs(out - ref)))
        # bf16 weights/activations/output (f32 accumulation) -> loose tolerance.
        assert jnp.allclose(out, ref, rtol=4e-2, atol=4e-2), (
            f"mismatch (dilation={dil}, tile={mrt}), max abs err={max_err}")

    print("KERNEL_OK")
</pallas_src>

<mosaic_0001>
module attributes {stable_mosaic.version = 11 : i64} {
  func.func @_fused_daspp_kernel(%arg0: i32, %arg1: i32, %arg2: memref<2x26x16x128xbf16, #tpu.memory_space<any>>, %arg3: memref<128x128xbf16, #tpu.memory_space<vmem>>, %arg4: memref<1x128xf32, #tpu.memory_space<vmem>>, %arg5: memref<3x384x128xbf16, #tpu.memory_space<vmem>>, %arg6: memref<1x128xf32, #tpu.memory_space<vmem>>, %arg7: memref<1x8x16x128xbf16, #tpu.memory_space<vmem>>, %arg8: memref<2x10x16x128xbf16, #tpu.memory_space<vmem>>, %arg9: memref<2x!tpu.dma_semaphore, #tpu.memory_space<semaphore_mem>>, %arg10: memref<10x32x128xbf16, #tpu.memory_space<vmem>>) attributes {dimension_semantics = [#tpu.dimension_semantics<parallel>, #tpu.dimension_semantics<arbitrary>], iteration_bounds = array<i64: 2, 3>, scalar_prefetch = 0 : i64, scratch_operands = 3 : i64, tpu.core_type = #tpu.core_type<tc>, window_params = [{}, {pipeline_mode = #tpu.pipeline_mode<synchronous>, transform_indices = @transform_1, window_bounds = array<i64: 128, 128>}, {pipeline_mode = #tpu.pipeline_mode<synchronous>, transform_indices = @transform_2, window_bounds = array<i64: 1, 128>}, {pipeline_mode = #tpu.pipeline_mode<synchronous>, transform_indices = @transform_3, window_bounds = array<i64: 3, 384, 128>}, {pipeline_mode = #tpu.pipeline_mode<synchronous>, transform_indices = @transform_4, window_bounds = array<i64: 1, 128>}, {transform_indices = @transform_5, window_bounds = array<i64: 1, 8, 16, 128>}]} {
    %c2_i32 = arith.constant 2 : i32
    %0 = arith.remsi %arg1, %c2_i32 : i32
    %c0_i32 = arith.constant 0 : i32
    %1 = arith.cmpi eq, %arg1, %c0_i32 : i32
    %2 = arith.extui %1 : i1 to i32
    %c0_i32_0 = arith.constant 0 : i32
    %3 = arith.cmpi ne, %2, %c0_i32_0 : i32
    scf.if %3 {
      %c0_i32_31 = arith.constant 0 : i32
      %c0_i32_32 = arith.constant 0 : i32
      %c0_i32_33 = arith.constant 0 : i32
      %c0_i32_34 = arith.constant 0 : i32
      %c0_i32_35 = arith.constant 0 : i32
      %54 = tpu.memref_slice %arg2[%arg0, %c0_i32_33, %c0_i32_34, %c0_i32_35] : memref<2x26x16x128xbf16, #tpu.memory_space<any>> -> memref<1x10x16x128xbf16, #tpu.memory_space<any>>
      %55 = tpu.memref_squeeze %54 : memref<1x10x16x128xbf16, #tpu.memory_space<any>> -> memref<10x16x128xbf16, #tpu.memory_space<any>>
      %c0_i32_36 = arith.constant 0 : i32
      %c0_i32_37 = arith.constant 0 : i32
      %c0_i32_38 = arith.constant 0 : i32
      %56 = tpu.memref_slice %arg8[%c0_i32_31, %c0_i32_36, %c0_i32_37, %c0_i32_38] : memref<2x10x16x128xbf16, #tpu.memory_space<vmem>> -> memref<1x10x16x128xbf16, #tpu.memory_space<vmem>>
      %57 = tpu.memref_squeeze %56 : memref<1x10x16x128xbf16, #tpu.memory_space<vmem>> -> memref<10x16x128xbf16, #tpu.memory_space<vmem>>
      %58 = tpu.memref_slice %arg9[%c0_i32_32] : memref<2x!tpu.dma_semaphore, #tpu.memory_space<semaphore_mem>> -> memref<1x!tpu.dma_semaphore, #tpu.memory_space<semaphore_mem>>
      %59 = tpu.memref_squeeze %58 : memref<1x!tpu.dma_semaphore, #tpu.memory_space<semaphore_mem>> -> memref<!tpu.dma_semaphore, #tpu.memory_space<semaphore_mem>>
      tpu.enqueue_dma source(%55 : memref<10x16x128xbf16, #tpu.memory_space<any>>) target(%57 : memref<10x16x128xbf16, #tpu.memory_space<vmem>>) target_semaphore(%59 : memref<!tpu.dma_semaphore, #tpu.memory_space<semaphore_mem>>)
      %cst_39 = arith.constant 0.000000e+00 : bf16
      %60 = vector.broadcast %cst_39 : bf16 to vector<10x8x128xbf16>
      %c0_40 = arith.constant 0 : index
      %c0_41 = arith.constant 0 : index
      %c0_42 = arith.constant 0 : index
      %61 = vector.load %arg10[%c0_40, %c0_41, %c0_42] : memref<10x32x128xbf16, #tpu.memory_space<vmem>>, vector<10x8x128xbf16>
      tpu.vector_store %arg10[%c0_40, %c0_41, %c0_42], %60 {strides = array<i32>} : memref<10x32x128xbf16, #tpu.memory_space<vmem>>, vector<10x8x128xbf16>,
      %cst_43 = arith.constant 0.000000e+00 : bf16
      %62 = vector.broadcast %cst_43 : bf16 to vector<10x8x128xbf16>
      %c0_44 = arith.constant 0 : index
      %c24 = arith.constant 24 : index
      %c0_45 = arith.constant 0 : index
      %63 = vector.load %arg10[%c0_44, %c24, %c0_45] : memref<10x32x128xbf16, #tpu.memory_space<vmem>>, vector<10x8x128xbf16>
      tpu.vector_store %arg10[%c0_44, %c24, %c0_45], %62 {strides = array<i32>} : memref<10x32x128xbf16, #tpu.memory_space<vmem>>, vector<10x8x128xbf16>,
    } else {
    }
    %c1_i32 = arith.constant 1 : i32
    %4 = arith.addi %arg1, %c1_i32 : i32
    %c3_i32 = arith.constant 3 : i32
    %5 = arith.cmpi slt, %4, %c3_i32 : i32
    %6 = arith.extui %5 : i1 to i32
    %c0_i32_1 = arith.constant 0 : i32
    %7 = arith.cmpi ne, %6, %c0_i32_1 : i32
    scf.if %7 {
      %c1_i32_31 = arith.constant 1 : i32
      %54 = arith.subi %c1_i32_31, %0 : i32
      %c1_i32_32 = arith.constant 1 : i32
      %55 = arith.addi %arg1, %c1_i32_32 : i32
      %c8_i32 = arith.constant 8 : i32
      %56 = arith.muli %55, %c8_i32 : i32
      %c2_i32_33 = arith.constant 2 : i32
      %57 = arith.addi %56, %c2_i32_33 : i32
      %c0_i32_34 = arith.constant 0 : i32
      %c0_i32_35 = arith.constant 0 : i32
      %58 = tpu.memref_slice %arg2[%arg0, %57, %c0_i32_34, %c0_i32_35] : memref<2x26x16x128xbf16, #tpu.memory_space<any>> -> memref<1x8x16x128xbf16, #tpu.memory_space<any>>
      %59 = tpu.memref_squeeze %58 : memref<1x8x16x128xbf16, #tpu.memory_space<any>> -> memref<8x16x128xbf16, #tpu.memory_space<any>>
      %c0_i32_36 = arith.constant 0 : i32
      %c0_i32_37 = arith.constant 0 : i32
      %c0_i32_38 = arith.constant 0 : i32
      %60 = tpu.memref_slice %arg8[%54, %c0_i32_36, %c0_i32_37, %c0_i32_38] : memref<2x10x16x128xbf16, #tpu.memory_space<vmem>> -> memref<1x8x16x128xbf16, #tpu.memory_space<vmem>>
      %61 = tpu.memref_squeeze %60 : memref<1x8x16x128xbf16, #tpu.memory_space<vmem>> -> memref<8x16x128xbf16, #tpu.memory_space<vmem>>
      %62 = tpu.memref_slice %arg9[%54] : memref<2x!tpu.dma_semaphore, #tpu.memory_space<semaphore_mem>> -> memref<1x!tpu.dma_semaphore, #tpu.memory_space<semaphore_mem>>
      %63 = tpu.memref_squeeze %62 : memref<1x!tpu.dma_semaphore, #tpu.memory_space<semaphore_mem>> -> memref<!tpu.dma_semaphore, #tpu.memory_space<semaphore_mem>>
      tpu.enqueue_dma source(%59 : memref<8x16x128xbf16, #tpu.memory_space<any>>) target(%61 : memref<8x16x128xbf16, #tpu.memory_space<vmem>>) target_semaphore(%63 : memref<!tpu.dma_semaphore, #tpu.memory_space<semaphore_mem>>)
    } else {
    }
    %c0_i32_2 = arith.constant 0 : i32
    %8 = arith.cmpi eq, %arg1, %c0_i32_2 : i32
    %9 = arith.extui %8 : i1 to i32
    %c0_i32_3 = arith.constant 0 : i32
    %10 = arith.cmpi ne, %9, %c0_i32_3 : i32
    scf.if %10 {
      %c0_i32_31 = arith.constant 0 : i32
      %c0_i32_32 = arith.constant 0 : i32
      %c0_i32_33 = arith.constant 0 : i32
      %c0_i32_34 = arith.constant 0 : i32
      %c0_i32_35 = arith.constant 0 : i32
      %54 = tpu.memref_slice %arg2[%arg0, %c0_i32_33, %c0_i32_34, %c0_i32_35] : memref<2x26x16x128xbf16, #tpu.memory_space<any>> -> memref<1x10x16x128xbf16, #tpu.memory_space<any>>
      %55 = tpu.memref_squeeze %54 : memref<1x10x16x128xbf16, #tpu.memory_space<any>> -> memref<10x16x128xbf16, #tpu.memory_space<any>>
      %c0_i32_36 = arith.constant 0 : i32
      %c0_i32_37 = arith.constant 0 : i32
      %c0_i32_38 = arith.constant 0 : i32
      %56 = tpu.memref_slice %arg8[%c0_i32_31, %c0_i32_36, %c0_i32_37, %c0_i32_38] : memref<2x10x16x128xbf16, #tpu.memory_space<vmem>> -> memref<1x10x16x128xbf16, #tpu.memory_space<vmem>>
      %57 = tpu.memref_squeeze %56 : memref<1x10x16x128xbf16, #tpu.memory_space<vmem>> -> memref<10x16x128xbf16, #tpu.memory_space<vmem>>
      %58 = tpu.memref_slice %arg9[%c0_i32_32] : memref<2x!tpu.dma_semaphore, #tpu.memory_space<semaphore_mem>> -> memref<1x!tpu.dma_semaphore, #tpu.memory_space<semaphore_mem>>
      %59 = tpu.memref_squeeze %58 : memref<1x!tpu.dma_semaphore, #tpu.memory_space<semaphore_mem>> -> memref<!tpu.dma_semaphore, #tpu.memory_space<semaphore_mem>>
      tpu.wait_dma2 semaphore(%59 : memref<!tpu.dma_semaphore, #tpu.memory_space<semaphore_mem>>) src(%55 : memref<10x16x128xbf16, #tpu.memory_space<any>>) dst(%57 : memref<10x16x128xbf16, #tpu.memory_space<vmem>>)
    } else {
    }
    %c0_i32_4 = arith.constant 0 : i32
    %11 = arith.cmpi sgt, %arg1, %c0_i32_4 : i32
    %12 = arith.extui %11 : i1 to i32
    %c0_i32_5 = arith.constant 0 : i32
    %13 = arith.cmpi ne, %12, %c0_i32_5 : i32
    scf.if %13 {
      %c8_i32 = arith.constant 8 : i32
      %54 = arith.muli %arg1, %c8_i32 : i32
      %c2_i32_31 = arith.constant 2 : i32
      %55 = arith.addi %54, %c2_i32_31 : i32
      %c0_i32_32 = arith.constant 0 : i32
      %c0_i32_33 = arith.constant 0 : i32
      %56 = tpu.memref_slice %arg2[%arg0, %55, %c0_i32_32, %c0_i32_33] : memref<2x26x16x128xbf16, #tpu.memory_space<any>> -> memref<1x8x16x128xbf16, #tpu.memory_space<any>>
      %57 = tpu.memref_squeeze %56 : memref<1x8x16x128xbf16, #tpu.memory_space<any>> -> memref<8x16x128xbf16, #tpu.memory_space<any>>
      %c0_i32_34 = arith.constant 0 : i32
      %c0_i32_35 = arith.constant 0 : i32
      %c0_i32_36 = arith.constant 0 : i32
      %58 = tpu.memref_slice %arg8[%0, %c0_i32_34, %c0_i32_35, %c0_i32_36] : memref<2x10x16x128xbf16, #tpu.memory_space<vmem>> -> memref<1x8x16x128xbf16, #tpu.memory_space<vmem>>
      %59 = tpu.memref_squeeze %58 : memref<1x8x16x128xbf16, #tpu.memory_space<vmem>> -> memref<8x16x128xbf16, #tpu.memory_space<vmem>>
      %60 = tpu.memref_slice %arg9[%0] : memref<2x!tpu.dma_semaphore, #tpu.memory_space<semaphore_mem>> -> memref<1x!tpu.dma_semaphore, #tpu.memory_space<semaphore_mem>>
      %61 = tpu.memref_squeeze %60 : memref<1x!tpu.dma_semaphore, #tpu.memory_space<semaphore_mem>> -> memref<!tpu.dma_semaphore, #tpu.memory_space<semaphore_mem>>
      tpu.wait_dma2 semaphore(%61 : memref<!tpu.dma_semaphore, #tpu.memory_space<semaphore_mem>>) src(%57 : memref<8x16x128xbf16, #tpu.memory_space<any>>) dst(%59 : memref<8x16x128xbf16, #tpu.memory_space<vmem>>)
    } else {
    }
    %c0_i32_6 = arith.constant 0 : i32
    %14 = arith.cmpi eq, %arg1, %c0_i32_6 : i32
    %15 = arith.extui %14 : i1 to i32
    %c0_i32_7 = arith.constant 0 : i32
    %16 = arith.cmpi ne, %15, %c0_i32_7 : i32
    scf.if %16 {
      %c0_31 = arith.constant 0 : index
      %c0_32 = arith.constant 0 : index
      %c0_33 = arith.constant 0 : index
      %c0_34 = arith.constant 0 : index
      %54 = vector.load %arg8[%c0_31, %c0_32, %c0_33, %c0_34] : memref<2x10x16x128xbf16, #tpu.memory_space<vmem>>, vector<1x10x16x128xbf16>
      %55 = vector.shape_cast %54 : vector<1x10x16x128xbf16> to vector<10x16x128xbf16>
      %c0_35 = arith.constant 0 : index
      %c0_36 = arith.constant 0 : index
      %56 = vector.load %arg3[%c0_35, %c0_36] : memref<128x128xbf16, #tpu.memory_space<vmem>>, vector<128x128xbf16>
      %cst_37 = arith.constant dense<0.000000e+00> : vector<10x16x128xf32>
      %57 = tpu.matmul %55, %56, %cst_37 {dimension_numbers = #tpu.dot_dimension_numbers<[2], [0], [0, 1], [1], [0, 0, 0, 1, 1, 1], [], []>} : vector<10x16x128xbf16>, vector<128x128xbf16>, vector<10x16x128xf32> -> vector<10x16x128xf32>
      %c0_38 = arith.constant 0 : index
      %c0_39 = arith.constant 0 : index
      %58 = vector.load %arg4[%c0_38, %c0_39] : memref<1x128xf32, #tpu.memory_space<vmem>>, vector<1x128xf32>
      %59 = vector.shape_cast %58 : vector<1x128xf32> to vector<1x1x128xf32>
      %60 = vector.broadcast %59 : vector<1x1x128xf32> to vector<10x16x128xf32>
      %61 = arith.addf %57, %60 : vector<10x16x128xf32>
      %cst_40 = arith.constant 0.000000e+00 : f32
      %62 = vector.broadcast %cst_40 : f32 to vector<10x16x128xf32>
      %63 = arith.maximumf %61, %62 : vector<10x16x128xf32>
      %64 = arith.truncf %63 : vector<10x16x128xf32> to vector<10x16x128xbf16>
      %c0_41 = arith.constant 0 : index
      %c8 = arith.constant 8 : index
      %c0_42 = arith.constant 0 : index
      %65 = vector.load %arg10[%c0_41, %c8, %c0_42] : memref<10x32x128xbf16, #tpu.memory_space<vmem>>, vector<10x16x128xbf16>
      tpu.vector_store %arg10[%c0_41, %c8, %c0_42], %64 {strides = array<i32>} : memref<10x32x128xbf16, #tpu.memory_space<vmem>>, vector<10x16x128xbf16>,
      %cst_43 = arith.constant 0.000000e+00 : bf16
      %66 = vector.broadcast %cst_43 : bf16 to vector<1x32x128xbf16>
      %c0_44 = arith.constant 0 : index
      %c0_45 = arith.constant 0 : index
      %c0_46 = arith.constant 0 : index
      %67 = vector.load %arg10[%c0_44, %c0_45, %c0_46] : memref<10x32x128xbf16, #tpu.memory_space<vmem>>, vector<1x32x128xbf16>
      tpu.vector_store %arg10[%c0_44, %c0_45, %c0_46], %66 {strides = array<i32>} : memref<10x32x128xbf16, #tpu.memory_space<vmem>>, vector<1x32x128xbf16>,
    } else {
    }
    %c0_i32_8 = arith.constant 0 : i32
    %17 = arith.cmpi sgt, %arg1, %c0_i32_8 : i32
    %18 = arith.extui %17 : i1 to i32
    %c0_i32_9 = arith.constant 0 : i32
    %19 = arith.cmpi ne, %18, %c0_i32_9 : i32
    scf.if %19 {
      %c8 = arith.constant 8 : index
      %c0_31 = arith.constant 0 : index
      %c0_32 = arith.constant 0 : index
      %54 = vector.load %arg10[%c8, %c0_31, %c0_32] : memref<10x32x128xbf16, #tpu.memory_space<vmem>>, vector<2x32x128xbf16>
      %c0_33 = arith.constant 0 : index
      %c0_34 = arith.constant 0 : index
      %c0_35 = arith.constant 0 : index
      %55 = vector.load %arg10[%c0_33, %c0_34, %c0_35] : memref<10x32x128xbf16, #tpu.memory_space<vmem>>, vector<2x32x128xbf16>
      tpu.vector_store %arg10[%c0_33, %c0_34, %c0_35], %54 {strides = array<i32>} : memref<10x32x128xbf16, #tpu.memory_space<vmem>>, vector<2x32x128xbf16>,
      %56 = arith.index_cast %0 : i32 to index
      %c0_36 = arith.constant 0 : index
      %c0_37 = arith.constant 0 : index
      %c0_38 = arith.constant 0 : index
      %57 = vector.load %arg8[%56, %c0_36, %c0_37, %c0_38] : memref<2x10x16x128xbf16, #tpu.memory_space<vmem>>, vector<1x8x16x128xbf16>
      %58 = vector.shape_cast %57 : vector<1x8x16x128xbf16> to vector<8x16x128xbf16>
      %c0_39 = arith.constant 0 : index
      %c0_40 = arith.constant 0 : index
      %59 = vector.load %arg3[%c0_39, %c0_40] : memref<128x128xbf16, #tpu.memory_space<vmem>>, vector<128x128xbf16>
      %cst_41 = arith.constant dense<0.000000e+00> : vector<8x16x128xf32>
      %60 = tpu.matmul %58, %59, %cst_41 {dimension_numbers = #tpu.dot_dimension_numbers<[2], [0], [0, 1], [1], [0, 0, 0, 1, 1, 1], [], []>} : vector<8x16x128xbf16>, vector<128x128xbf16>, vector<8x16x128xf32> -> vector<8x16x128xf32>
      %c0_42 = arith.constant 0 : index
      %c0_43 = arith.constant 0 : index
      %61 = vector.load %arg4[%c0_42, %c0_43] : memref<1x128xf32, #tpu.memory_space<vmem>>, vector<1x128xf32>
      %62 = vector.shape_cast %61 : vector<1x128xf32> to vector<1x1x128xf32>
      %63 = vector.broadcast %62 : vector<1x1x128xf32> to vector<8x16x128xf32>
      %64 = arith.addf %60, %63 : vector<8x16x128xf32>
      %cst_44 = arith.constant 0.000000e+00 : f32
      %65 = vector.broadcast %cst_44 : f32 to vector<8x16x128xf32>
      %66 = arith.maximumf %64, %65 : vector<8x16x128xf32>
      %67 = arith.truncf %66 : vector<8x16x128xf32> to vector<8x16x128xbf16>
      %c2_45 = arith.constant 2 : index
      %c8_46 = arith.constant 8 : index
      %c0_47 = arith.constant 0 : index
      %68 = vector.load %arg10[%c2_45, %c8_46, %c0_47] : memref<10x32x128xbf16, #tpu.memory_space<vmem>>, vector<8x16x128xbf16>
      tpu.vector_store %arg10[%c2_45, %c8_46, %c0_47], %67 {strides = array<i32>} : memref<10x32x128xbf16, #tpu.memory_space<vmem>>, vector<8x16x128xbf16>,
    } else {
    }
    %c2_i32_10 = arith.constant 2 : i32
    %20 = arith.cmpi eq, %arg1, %c2_i32_10 : i32
    %21 = arith.extui %20 : i1 to i32
    %c0_i32_11 = arith.constant 0 : i32
    %22 = arith.cmpi ne, %21, %c0_i32_11 : i32
    scf.if %22 {
      %cst_31 = arith.constant 0.000000e+00 : bf16
      %54 = vector.broadcast %cst_31 : bf16 to vector<1x32x128xbf16>
      %c9 = arith.constant 9 : index
      %c0_32 = arith.constant 0 : index
      %c0_33 = arith.constant 0 : index
      %55 = vector.load %arg10[%c9, %c0_32, %c0_33] : memref<10x32x128xbf16, #tpu.memory_space<vmem>>, vector<1x32x128xbf16>
      tpu.vector_store %arg10[%c9, %c0_32, %c0_33], %54 {strides = array<i32>} : memref<10x32x128xbf16, #tpu.memory_space<vmem>>, vector<1x32x128xbf16>,
    } else {
    }
    %c0 = arith.constant 0 : index
    %c0_12 = arith.constant 0 : index
    %c0_13 = arith.constant 0 : index
    %23 = vector.load %arg10[%c0, %c0_12, %c0_13] : memref<10x32x128xbf16, #tpu.memory_space<vmem>>, vector<10x32x128xbf16>
    %24 = vector.extract_strided_slice %23 {offsets = [0, 7, 0], sizes = [10, 16, 128], strides = [1, 1, 1]} : vector<10x32x128xbf16> to vector<10x16x128xbf16>
    %25 = vector.extract_strided_slice %23 {offsets = [0, 8, 0], sizes = [10, 16, 128], strides = [1, 1, 1]} : vector<10x32x128xbf16> to vector<10x16x128xbf16>
    %26 = vector.extract_strided_slice %23 {offsets = [0, 9, 0], sizes = [10, 16, 128], strides = [1, 1, 1]} : vector<10x32x128xbf16> to vector<10x16x128xbf16>
    %27 = tpu.concatenate %24, %25, %26 in 2 : vector<10x16x128xbf16>, vector<10x16x128xbf16>, vector<10x16x128xbf16> -> vector<10x16x384xbf16>
    %cst = arith.constant 0.000000e+00 : f32
    %28 = vector.broadcast %cst : f32 to vector<8x16x128xf32>
    %29 = vector.extract_strided_slice %27 {offsets = [0, 0, 0], sizes = [8, 16, 384], strides = [1, 1, 1]} : vector<10x16x384xbf16> to vector<8x16x384xbf16>
    %c0_14 = arith.constant 0 : index
    %c0_15 = arith.constant 0 : index
    %c0_16 = arith.constant 0 : index
    %30 = vector.load %arg5[%c0_14, %c0_15, %c0_16] : memref<3x384x128xbf16, #tpu.memory_space<vmem>>, vector<1x384x128xbf16>
    %31 = vector.shape_cast %30 : vector<1x384x128xbf16> to vector<384x128xbf16>
    %cst_17 = arith.constant dense<0.000000e+00> : vector<8x16x128xf32>
    %32 = tpu.matmul %29, %31, %cst_17 {dimension_numbers = #tpu.dot_dimension_numbers<[2], [0], [0, 1], [1], [0, 0, 0, 1, 1, 1], [], []>} : vector<8x16x384xbf16>, vector<384x128xbf16>, vector<8x16x128xf32> -> vector<8x16x128xf32>
    %33 = arith.addf %28, %32 : vector<8x16x128xf32>
    %34 = vector.extract_strided_slice %27 {offsets = [1, 0, 0], sizes = [8, 16, 384], strides = [1, 1, 1]} : vector<10x16x384xbf16> to vector<8x16x384xbf16>
    %c1 = arith.constant 1 : index
    %c0_18 = arith.constant 0 : index
    %c0_19 = arith.constant 0 : index
    %35 = vector.load %arg5[%c1, %c0_18, %c0_19] : memref<3x384x128xbf16, #tpu.memory_space<vmem>>, vector<1x384x128xbf16>
    %36 = vector.shape_cast %35 : vector<1x384x128xbf16> to vector<384x128xbf16>
    %cst_20 = arith.constant dense<0.000000e+00> : vector<8x16x128xf32>
    %37 = tpu.matmul %34, %36, %cst_20 {dimension_numbers = #tpu.dot_dimension_numbers<[2], [0], [0, 1], [1], [0, 0, 0, 1, 1, 1], [], []>} : vector<8x16x384xbf16>, vector<384x128xbf16>, vector<8x16x128xf32> -> vector<8x16x128xf32>
    %38 = arith.addf %33, %37 : vector<8x16x128xf32>
    %39 = vector.extract_strided_slice %27 {offsets = [2, 0, 0], sizes = [8, 16, 384], strides = [1, 1, 1]} : vector<10x16x384xbf16> to vector<8x16x384xbf16>
    %c2 = arith.constant 2 : index
    %c0_21 = arith.constant 0 : index
    %c0_22 = arith.constant 0 : index
    %40 = vector.load %arg5[%c2, %c0_21, %c0_22] : memref<3x384x128xbf16, #tpu.memory_space<vmem>>, vector<1x384x128xbf16>
    %41 = vector.shape_cast %40 : vector<1x384x128xbf16> to vector<384x128xbf16>
    %cst_23 = arith.constant dense<0.000000e+00> : vector<8x16x128xf32>
    %42 = tpu.matmul %39, %41, %cst_23 {dimension_numbers = #tpu.dot_dimension_numbers<[2], [0], [0, 1], [1], [0, 0, 0, 1, 1, 1], [], []>} : vector<8x16x384xbf16>, vector<384x128xbf16>, vector<8x16x128xf32> -> vector<8x16x128xf32>
    %43 = arith.addf %38, %42 : vector<8x16x128xf32>
    %c0_24 = arith.constant 0 : index
    %c0_25 = arith.constant 0 : index
    %44 = vector.load %arg6[%c0_24, %c0_25] : memref<1x128xf32, #tpu.memory_space<vmem>>, vector<1x128xf32>
    %45 = vector.shape_cast %44 : vector<1x128xf32> to vector<1x1x128xf32>
    %46 = vector.broadcast %45 : vector<1x1x128xf32> to vector<8x16x128xf32>
    %47 = arith.addf %43, %46 : vector<8x16x128xf32>
    %cst_26 = arith.constant 0.000000e+00 : f32
    %48 = vector.broadcast %cst_26 : f32 to vector<8x16x128xf32>
    %49 = arith.maximumf %47, %48 : vector<8x16x128xf32>
    %50 = arith.truncf %49 : vector<8x16x128xf32> to vector<8x16x128xbf16>
    %c0_27 = arith.constant 0 : index
    %c0_28 = arith.constant 0 : index
    %c0_29 = arith.constant 0 : index
    %c0_30 = arith.constant 0 : index
    %51 = vector.load %arg7[%c0_27, %c0_28, %c0_29, %c0_30] : memref<1x8x16x128xbf16, #tpu.memory_space<vmem>>, vector<1x8x16x128xbf16>
    %52 = vector.shape_cast %51 : vector<1x8x16x128xbf16> to vector<8x16x128xbf16>
    %53 = vector.shape_cast %50 : vector<8x16x128xbf16> to vector<1x8x16x128xbf16>
    tpu.vector_store %arg7[%c0_27, %c0_28, %c0_29, %c0_30], %53 {strides = array<i32>} : memref<1x8x16x128xbf16, #tpu.memory_space<vmem>>, vector<1x8x16x128xbf16>,
    return
  }
  func.func @transform_1(%arg0: i32, %arg1: i32) -> (i32, i32) {
    %c0_i32 = arith.constant 0 : i32
    %c0_i32_0 = arith.constant 0 : i32
    %c0_i32_1 = arith.constant 0 : i32
    return %c0_i32, %c0_i32_0 : i32, i32
  }
  func.func @transform_2(%arg0: i32, %arg1: i32) -> (i32, i32) {
    %c0_i32 = arith.constant 0 : i32
    %c0_i32_0 = arith.constant 0 : i32
    %c0_i32_1 = arith.constant 0 : i32
    return %c0_i32, %c0_i32_0 : i32, i32
  }
  func.func @transform_3(%arg0: i32, %arg1: i32) -> (i32, i32, i32) {
    %c0_i32 = arith.constant 0 : i32
    %c0_i32_0 = arith.constant 0 : i32
    %c0_i32_1 = arith.constant 0 : i32
    %c0_i32_2 = arith.constant 0 : i32
    return %c0_i32, %c0_i32_0, %c0_i32_1 : i32, i32, i32
  }
  func.func @transform_4(%arg0: i32, %arg1: i32) -> (i32, i32) {
    %c0_i32 = arith.constant 0 : i32
    %c0_i32_0 = arith.constant 0 : i32
    %c0_i32_1 = arith.constant 0 : i32
    return %c0_i32, %c0_i32_0 : i32, i32
  }
  func.func @transform_5(%arg0: i32, %arg1: i32) -> (i32, i32, i32, i32) {
    %c0_i32 = arith.constant 0 : i32
    %c0_i32_0 = arith.constant 0 : i32
    %c0_i32_1 = arith.constant 0 : i32
    return %arg0, %arg1, %c0_i32, %c0_i32_0 : i32, i32, i32, i32
  }
}

</mosaic_0001>

<llo_original>
// kernel: daspp_conv_branch.1
$region0: #{daspp_conv_branch.1}
  #allocation0 [shape = 'u32[]', space=smem, size = 0x4, offset = 0x4, fixed_abs, tag = 'smem constant byte address 0x4 - core index']
  #allocation1 [shape = 'u32[72,128]{1,0:T(1,128)}', space=vmem, size = 0x9000, scoped, tag = 'internal scratch']
  #allocation2 [shape = 'bf16[2,10,16,128]{3,2,1,0:T(8,128)(2,1)}', space=vmem, size = 0x14000, scoped, tag = 'scratch operand']
  #allocation3 [shape = 's32[2]{0}', space=sflag, size = 0x8, scoped, tag = 'scratch operand']
  #allocation4 [shape = 'bf16[10,32,128]{2,1,0:T(8,128)(2,1)}', space=vmem, size = 0x14000, scoped, tag = 'scratch operand']
  #allocation5 [shape = 's32[]', space=sflag, size = 0x4, offset = 0, fixed_abs, tag = 'sflag constant byte address 0x0 - dummy sync flag']
  #allocation6 [shape = 's32[]', space=sflag, size = 0x4, offset = 0, fixed_abs, tag = 'sflag constant byte address 0x0 - dummy sync flag']
  %s0 = inlined_call_operand.vmem [shape: bf16[2,26,16,128], index: 0, kind: input, shape index: {}]
  %s1 = inlined_call_operand.vmem [shape: bf16[128,128], index: 1, kind: input, shape index: {}]
  %s2 = inlined_call_operand.vmem [shape: f32[1,128], index: 2, kind: input, shape index: {}]
  %s3 = inlined_call_operand.vmem [shape: bf16[3,384,128], index: 3, kind: input, shape index: {}]
  %s4 = inlined_call_operand.vmem [shape: f32[1,128], index: 4, kind: input, shape index: {}]
  %s5 = inlined_call_operand.vmem [shape: bf16[2,24,16,128], index: 5, kind: output, shape index: {}]
  %s6 = sld [smem:[#allocation0]]
  $region115: #{daspp_conv_branch.1} parent=0
    _
  %s8 = ssub.s32 1, %s6
  %s9 = scalar_select 0, %s8, %s6
  loop: start=0, step=1, limit=8
  $region2: #{daspp_conv_branch.1} parent=0 // loop_pre_header
    _
  $region3: #{daspp_conv_branch.1} parent=0 // loop_header
    %s11 = sphi 0, %s15
    %p12 = scmp.ge.s32.totalorder %s11, 8
    %s18 = sphi 0, %s30
    %s19 = sphi 0, %s26
    %s20 = sphi 0, %s18
    %s21 = sphi 0, %s19
    %s22 = sphi 0, %s20
    %s23 = sphi 0, %s21
    %s31 = sphi 0, %s31
    %s33 = sphi 0, %s31
    %s34 = sphi 0, %s33
    %s48 = sphi 0, %s34
    %s52 = sphi 0, %s52
    %s54 = sphi 0, %s52
    %s55 = sphi 0, %s54
    %s69 = sphi 0, %s55
    %s73 = sphi 0, %s73
    %s75 = sphi 0, %s73
    %s76 = sphi 0, %s75
    %s90 = sphi 0, %s76
    %s94 = sphi 0, %s94
    %s96 = sphi 0, %s94
    %s97 = sphi 0, %s96
    %s111 = sphi 0, %s97
    %s119 = sphi 0, %s121
    %s122 = sphi 0, %s119
    %s123 = sphi 0, %s122
    %s139 = sphi 0, %s123
  $region4: #{daspp_conv_branch.1} parent=0 // loop_header_branch
    %14 = sbr.rel (%p12) target = $region8
  $region5: #{daspp_conv_branch.1} parent=0 // loop_body
    %s16 = ssub.s32 %s11, 1
    %s17 = ssub.s32 %s11, 2
    %s24 = sadd.s32 1, %s19
    %p25 = scmp.ge.s32.totalorder %s24, 3
    %s26 = scalar_select %p25, 0, %s24
    %s27 = sadd.s32 1, %s18
    %s28 = scalar_select %p25, %s27, %s18
    %p29 = scmp.ge.s32.totalorder %s28, 2
    %s30 = scalar_select %p29, 0, %s28
    %s32 = sadd.s32 %s31, 1
    %p35 = scmp.eq.s32.totalorder %s11, 5
    %p36 = scmp.ne.s32.totalorder %s31, %s33
    %p37 = scmp.eq.s32.totalorder %s11, 0
    %p38 = por %p36, %p37
    %p39 = scmp.ne.s32.totalorder %s31, %s33
    %p40 = scmp.eq.s32.totalorder %s16, 5
    %p41 = por %p39, %p40
    %p42 = scmp.ne.s32.totalorder %s33, %s34
    %p43 = scmp.eq.s32.totalorder %s16, 0
    %p44 = por %p42, %p43
    %p45 = scmp.ne.s32.totalorder %s33, %s34
    %p46 = scmp.eq.s32.totalorder %s17, 5
    %p47 = por %p45, %p46
    %p49 = scmp.ne.s32.totalorder %s34, %s48
    %p50 = scmp.eq.s32.totalorder %s17, 0
    %p51 = por %p49, %p50
    %s53 = sadd.s32 %s52, 1
    %p56 = scmp.eq.s32.totalorder %s11, 5
    %p57 = scmp.ne.s32.totalorder %s52, %s54
    %p58 = scmp.eq.s32.totalorder %s11, 0
    %p59 = por %p57, %p58
    %p60 = scmp.ne.s32.totalorder %s52, %s54
    %p61 = scmp.eq.s32.totalorder %s16, 5
    %p62 = por %p60, %p61
    %p63 = scmp.ne.s32.totalorder %s54, %s55
    %p64 = scmp.eq.s32.totalorder %s16, 0
    %p65 = por %p63, %p64
    %p66 = scmp.ne.s32.totalorder %s54, %s55
    %p67 = scmp.eq.s32.totalorder %s17, 5
    %p68 = por %p66, %p67
    %p70 = scmp.ne.s32.totalorder %s55, %s69
    %p71 = scmp.eq.s32.totalorder %s17, 0
    %p72 = por %p70, %p71
    %s74 = sadd.s32 %s73, 1
    %p77 = scmp.eq.s32.totalorder %s11, 5
    %p78 = scmp.ne.s32.totalorder %s73, %s75
    %p79 = scmp.eq.s32.totalorder %s11, 0
    %p80 = por %p78, %p79
    %p81 = scmp.ne.s32.totalorder %s73, %s75
    %p82 = scmp.eq.s32.totalorder %s16, 5
    %p83 = por %p81, %p82
    %p84 = scmp.ne.s32.totalorder %s75, %s76
    %p85 = scmp.eq.s32.totalorder %s16, 0
    %p86 = por %p84, %p85
    %p87 = scmp.ne.s32.totalorder %s75, %s76
    %p88 = scmp.eq.s32.totalorder %s17, 5
    %p89 = por %p87, %p88
    %p91 = scmp.ne.s32.totalorder %s76, %s90
    %p92 = scmp.eq.s32.totalorder %s17, 0
    %p93 = por %p91, %p92
    %s95 = sadd.s32 %s94, 1
    %p98 = scmp.eq.s32.totalorder %s11, 5
    %p99 = scmp.ne.s32.totalorder %s94, %s96
    %p100 = scmp.eq.s32.totalorder %s11, 0
    %p101 = por %p99, %p100
    %p102 = scmp.ne.s32.totalorder %s94, %s96
    %p103 = scmp.eq.s32.totalorder %s16, 5
    %p104 = por %p102, %p103
    %p105 = scmp.ne.s32.totalorder %s96, %s97
    %p106 = scmp.eq.s32.totalorder %s16, 0
    %p107 = por %p105, %p106
    %p108 = scmp.ne.s32.totalorder %s96, %s97
    %p109 = scmp.eq.s32.totalorder %s17, 5
    %p110 = por %p108, %p109
    %p112 = scmp.ne.s32.totalorder %s97, %s111
    %p113 = scmp.eq.s32.totalorder %s17, 0
    %p114 = por %p112, %p113
    %s115 = ssub.s32 %s18, %s30
    %s116 = ssub.s32 %s19, %s26
    %s117 = sor.u32 %s115, %s116
    %p118 = scmp.eq.s32.totalorder %s117, 0
    %s120 = sadd.s32 %s119, 1
    %s121 = scalar_select %p118, %s119, %s120
    %p124 = pneg %p118
    %p125 = scmp.eq.s32.totalorder %s11, 5
    %p126 = por %p124, %p125
    %p127 = scmp.ne.s32.totalorder %s119, %s122
    %p128 = scmp.eq.s32.totalorder %s11, 0
    %p129 = por %p127, %p128
    %p130 = scmp.ne.s32.totalorder %s119, %s122
    %p131 = scmp.eq.s32.totalorder %s16, 5
    %p132 = por %p130, %p131
    %p133 = scmp.ne.s32.totalorder %s122, %s123
    %p134 = scmp.eq.s32.totalorder %s16, 0
    %p135 = por %p133, %p134
    %p136 = scmp.ne.s32.totalorder %s122, %s123
    %p137 = scmp.eq.s32.totalorder %s17, 5
    %p138 = por %p136, %p137
    %p140 = scmp.ne.s32.totalorder %s123, %s139
    %p141 = scmp.eq.s32.totalorder %s17, 0
    %p142 = por %p140, %p141
    %p143 = scmp.le.s32.totalorder 1, %s11
    %p144 = scmp.lt.s32.totalorder %s11, 7
    %p145 = pnand %p143, %p144
    %p146 = pneg %p145
    // Predicated region
    $region9: #{daspp_conv_branch.1} parent=5 // pred_check
      _
    $region10: #{daspp_conv_branch.1} parent=5 // pred_check_branch
      %148 = sbr.rel (%p145) target = $region12
    $region11: #{daspp_conv_branch.1} parent=5 // pred_region
      %s149 = ssub.s32 %s11, 1
      // Predicated region
      $region13: #{daspp_conv_branch.1} parent=11 // pred_check
        %p150 = pneg %p44
      $region14: #{daspp_conv_branch.1} parent=11 // pred_check_branch
        %152 = sbr.rel (%p150) target = $region16
      $region15: #{daspp_conv_branch.1} parent=11 // pred_region
        _
      $region16: #{daspp_conv_branch.1} parent=11 // pred_fallthru
        _
      // Predicated region
      $region17: #{daspp_conv_branch.1} parent=11 // pred_check
        %p153 = pneg %p65
      $region18: #{daspp_conv_branch.1} parent=11 // pred_check_branch
        %155 = sbr.rel (%p153) target = $region20
      $region19: #{daspp_conv_branch.1} parent=11 // pred_region
        _
      $region20: #{daspp_conv_branch.1} parent=11 // pred_fallthru
        _
      // Predicated region
      $region21: #{daspp_conv_branch.1} parent=11 // pred_check
        %p156 = pneg %p86
      $region22: #{daspp_conv_branch.1} parent=11 // pred_check_branch
        %158 = sbr.rel (%p156) target = $region24
      $region23: #{daspp_conv_branch.1} parent=11 // pred_region
        _
      $region24: #{daspp_conv_branch.1} parent=11 // pred_fallthru
        _
      // Predicated region
      $region25: #{daspp_conv_branch.1} parent=11 // pred_check
        %p159 = pneg %p107
      $region26: #{daspp_conv_branch.1} parent=11 // pred_check_branch
        %161 = sbr.rel (%p159) target = $region28
      $region27: #{daspp_conv_branch.1} parent=11 // pred_region
        _
      $region28: #{daspp_conv_branch.1} parent=11 // pred_fallthru
        _
    $region12: #{daspp_conv_branch.1} parent=5 // pred_fallthru
      _
    %p162 = scmp.lt.s32.totalorder %s11, 6
    // Predicated region
    $region29: #{daspp_conv_branch.1} parent=5 // pred_check
      %p163 = pneg %p162
    $region30: #{daspp_conv_branch.1} parent=5 // pred_check_branch
      %165 = sbr.rel (%p163) target = $region32
    $region31: #{daspp_conv_branch.1} parent=5 // pred_region
      _
    $region32: #{daspp_conv_branch.1} parent=5 // pred_fallthru
      _
    %p166 = scmp.le.s32.totalorder 1, %s11
    %p167 = scmp.lt.s32.totalorder %s11, 7
    %p168 = pnand %p166, %p167
    %p169 = pneg %p168
    // Predicated region
    $region33: #{daspp_conv_branch.1} parent=5 // pred_check
      _
    $region34: #{daspp_conv_branch.1} parent=5 // pred_check_branch
      %171 = sbr.rel (%p168) target = $region36
    $region35: #{daspp_conv_branch.1} parent=5 // pred_region
      %s172 = ssub.s32 %s11, 1
      %p173 = pneg %p44
      %p174 = pneg %p41
      %p175 = pneg %p65
      %p176 = pneg %p62
      %p177 = pneg %p86
      %p178 = pneg %p83
      %p179 = pneg %p107
      %p180 = pneg %p104
      %p181 = pneg %p135
      %p182 = pneg %p132
      %s183 = smul.u32 8, %s21
      %p184 = scmp.lt.s32.totalorder %s20, 1
      %s185 = scalar_select %p184, %s20, 1
      %p186 = scmp.lt.s32.totalorder %s183, 23
      %s187 = scalar_select %p186, %s183, 23
      %s188 = smul.addr %s187, 2
      %s189 = smul.addr %s185, 48
      %s190 = sadd.s32 %s188, %s189
      %s191 = smul.addr %s190, 4
      %s192 = scalar_lea.vmem %s5, %s191
      %s193 = smul.u32 8, %s21
      %p194 = scmp.lt.s32.totalorder %s20, 1
      %s195 = scalar_select %p194, %s20, 1
      %p196 = scmp.lt.s32.totalorder %s193, 23
      %s197 = scalar_select %p196, %s193, 23
      %s198 = smul.addr %s197, 2
      %s199 = smul.addr %s195, 48
      %s200 = sadd.s32 %s198, %s199
      %s201 = smul.addr %s200, 4
      %s202 = scalar_lea.vmem %s5, %s201
      %s203 = smul.u32 8, %s21
      %p205 = scmp.lt.s32.totalorder %s21, 0
      %s206 = ssub.s32 0, %s21
      %s207 = scalar_select %p205, %s206, %s21
      %s208 = sand.u32 %s207, 1
      %s209 = ssub.s32 0, %s208
      %s210 = scalar_select %p205, %s209, %s208
      %p211 = scmp.eq.s32.totalorder %s21, 0
      // Predicated region
      $region37: #{daspp_conv_branch.1} parent=35 // pred_check
        %p212 = pneg %p211
      $region38: #{daspp_conv_branch.1} parent=35 // pred_check_branch
        %214 = sbr.rel (%p212) target = $region40
      $region39: #{daspp_conv_branch.1} parent=35 // pred_region
        %s215 = smul.u32 %s20, 52
        %s216 = smul.addr %s215, 4
        %s217 = scalar_lea.vmem %s0, %s216
        // Predicated region
        $region41: #{daspp_conv_branch.1} parent=39 // pred_check
          _
        $region42: #{daspp_conv_branch.1} parent=39 // pred_check_branch
          %219 = sbr.rel (0) target = $region44
        $region43: #{daspp_conv_branch.1} parent=39 // pred_region
          loop: start=0, step=1, limit=1
          $region45: #{daspp_conv_branch.1} parent=43 // loop_pre_header
            _
          $region46: #{daspp_conv_branch.1} parent=43 // loop_header
            %s221 = sphi 0, %s225
            %p222 = scmp.ge.s32.totalorder %s221, 1
            %s226 = sphi %s217, %s217
            %s227 = sphi [#allocation2], [#allocation2]
          $region47: #{daspp_conv_branch.1} parent=43 // loop_header_branch
            %224 = sbr.rel (%p222) target = $region51
          $region48: #{daspp_conv_branch.1} parent=43 // loop_body
            %v228 = vld [vmem:[%s226] sm:$0xff]
            %229 = vst [vmem:[%s227] sm:$0xff] %v228
            %v230 = vld [vmem:[%s226 + $0x8] sm:$0xff]
            %231 = vst [vmem:[%s227 + $0x8] sm:$0xff] %v230
            %v232 = vld [vmem:[%s226 + $0x10] sm:$0xff]
            %233 = vst [vmem:[%s227 + $0x10] sm:$0xff] %v232
            %v234 = vld [vmem:[%s226 + $0x18] sm:$0xff]
            %235 = vst [vmem:[%s227 + $0x18] sm:$0xff] %v234
            %v236 = vld [vmem:[%s226 + $0x20] sm:$0xff]
            %237 = vst [vmem:[%s227 + $0x20] sm:$0xff] %v236
            %v238 = vld [vmem:[%s226 + $0x28] sm:$0xff]
            %239 = vst [vmem:[%s227 + $0x28] sm:$0xff] %v238
            %v240 = vld [vmem:[%s226 + $0x30] sm:$0xff]
            %241 = vst [vmem:[%s227 + $0x30] sm:$0xff] %v240
            %v242 = vld [vmem:[%s226 + $0x38] sm:$0xff]
            %243 = vst [vmem:[%s227 + $0x38] sm:$0xff] %v242
            %v244 = vld [vmem:[%s226 + $0x40] sm:$0xff]
            %245 = vst [vmem:[%s227 + $0x40] sm:$0xff] %v244
            %v246 = vld [vmem:[%s226 + $0x48] sm:$0xff]
            %247 = vst [vmem:[%s227 + $0x48] sm:$0xff] %v246
          $region49: #{daspp_conv_branch.1} parent=43 // loop_footer
            %s225 = sadd.s32 1, %s221
          $region50: #{daspp_conv_branch.1} parent=43 // loop_footer_branch
            %220 = sbr.rel target = $region46
          $region51: #{daspp_conv_branch.1} parent=43 // loop_exit
            _
        $region44: #{daspp_conv_branch.1} parent=39 // pred_fallthru
          _
        // Predicated region
        $region52: #{daspp_conv_branch.1} parent=39 // pred_check
          _
        $region53: #{daspp_conv_branch.1} parent=39 // pred_check_branch
          %249 = sbr.rel target = $region55
        $region54: #{daspp_conv_branch.1} parent=39 // pred_region
          _
        $region55: #{daspp_conv_branch.1} parent=39 // pred_fallthru
          _
        // Predicated region
        $region56: #{daspp_conv_branch.1} parent=39 // pred_check
          _
        $region57: #{daspp_conv_branch.1} parent=39 // pred_check_branch
          %252 = sbr.rel (0) target = $region59
        $region58: #{daspp_conv_branch.1} parent=39 // pred_region
          %253 = vsyncadd [#allocation3], 1280
        $region59: #{daspp_conv_branch.1} parent=39 // pred_fallthru
          _
        %254 = vst [vmem:[#allocation4] sm:$0xf] 0
        %255 = vst [vmem:[#allocation4 + $0x10] sm:$0xf] 0
        %256 = vst [vmem:[#allocation4 + $0x20] sm:$0xf] 0
        %257 = vst [vmem:[#allocation4 + $0x30] sm:$0xf] 0
        %258 = vst [vmem:[#allocation4 + $0x40] sm:$0xf] 0
        %259 = vst [vmem:[#allocation4 + $0x50] sm:$0xf] 0
        %260 = vst [vmem:[#allocation4 + $0x60] sm:$0xf] 0
        %261 = vst [vmem:[#allocation4 + $0x70] sm:$0xf] 0
        %262 = vst [vmem:[#allocation4 + $0x80] sm:$0xf] 0
        %263 = vst [vmem:[#allocation4 + $0x90] sm:$0xf] 0
        %264 = vst [vmem:[#allocation4 + $0xc] sm:$0xf] 0
        %265 = vst [vmem:[#allocation4 + $0x1c] sm:$0xf] 0
        %266 = vst [vmem:[#allocation4 + $0x2c] sm:$0xf] 0
        %267 = vst [vmem:[#allocation4 + $0x3c] sm:$0xf] 0
        %268 = vst [vmem:[#allocation4 + $0x4c] sm:$0xf] 0
        %269 = vst [vmem:[#allocation4 + $0x5c] sm:$0xf] 0
        %270 = vst [vmem:[#allocation4 + $0x6c] sm:$0xf] 0
        %271 = vst [vmem:[#allocation4 + $0x7c] sm:$0xf] 0
        %272 = vst [vmem:[#allocation4 + $0x8c] sm:$0xf] 0
        %273 = vst [vmem:[#allocation4 + $0x9c] sm:$0xf] 0
      $region40: #{daspp_conv_branch.1} parent=35 // pred_fallthru
        _
      %s274 = sadd.s32 %s21, 1
      %p275 = scmp.lt.s32.totalorder %s274, 3
      // Predicated region
      $region60: #{daspp_conv_branch.1} parent=35 // pred_check
        %p276 = pneg %p275
      $region61: #{daspp_conv_branch.1} parent=35 // pred_check_branch
        %278 = sbr.rel (%p276) target = $region63
      $region62: #{daspp_conv_branch.1} parent=35 // pred_region
        %s279 = ssub.s32 1, %s210
        %s280 = smul.u32 %s274, 8
        %s281 = sadd.s32 %s280, 2
        %s282 = smul.u32 %s281, 2
        %s283 = smul.u32 %s20, 52
        %s284 = sadd.s32 %s282, %s283
        %s285 = smul.addr %s284, 4
        %s286 = scalar_lea.vmem %s0, %s285
        %s287 = smul.u32 %s279, 20
        %s288 = smul.addr %s287, 4
        %s289 = scalar_lea.vmem [#allocation2], %s288
        %s290 = scalar_lea.sflag [#allocation3], %s279
        // Predicated region
        $region64: #{daspp_conv_branch.1} parent=62 // pred_check
          _
        $region65: #{daspp_conv_branch.1} parent=62 // pred_check_branch
          %292 = sbr.rel (0) target = $region67
        $region66: #{daspp_conv_branch.1} parent=62 // pred_region
          loop: start=0, step=1, limit=1
          $region68: #{daspp_conv_branch.1} parent=66 // loop_pre_header
            _
          $region69: #{daspp_conv_branch.1} parent=66 // loop_header
            %s294 = sphi 0, %s298
            %p295 = scmp.ge.s32.totalorder %s294, 1
            %s299 = sphi %s286, %s286
            %s300 = sphi %s289, %s289
          $region70: #{daspp_conv_branch.1} parent=66 // loop_header_branch
            %297 = sbr.rel (%p295) target = $region74
          $region71: #{daspp_conv_branch.1} parent=66 // loop_body
            %v301 = vld [vmem:[%s299] sm:$0xff]
            %302 = vst [vmem:[%s300] sm:$0xff] %v301
            %v303 = vld [vmem:[%s299 + $0x8] sm:$0xff]
            %304 = vst [vmem:[%s300 + $0x8] sm:$0xff] %v303
            %v305 = vld [vmem:[%s299 + $0x10] sm:$0xff]
            %306 = vst [vmem:[%s300 + $0x10] sm:$0xff] %v305
            %v307 = vld [vmem:[%s299 + $0x18] sm:$0xff]
            %308 = vst [vmem:[%s300 + $0x18] sm:$0xff] %v307
            %v309 = vld [vmem:[%s299 + $0x20] sm:$0xff]
            %310 = vst [vmem:[%s300 + $0x20] sm:$0xff] %v309
            %v311 = vld [vmem:[%s299 + $0x28] sm:$0xff]
            %312 = vst [vmem:[%s300 + $0x28] sm:$0xff] %v311
            %v313 = vld [vmem:[%s299 + $0x30] sm:$0xff]
            %314 = vst [vmem:[%s300 + $0x30] sm:$0xff] %v313
            %v315 = vld [vmem:[%s299 + $0x38] sm:$0xff]
            %316 = vst [vmem:[%s300 + $0x38] sm:$0xff] %v315
          $region72: #{daspp_conv_branch.1} parent=66 // loop_footer
            %s298 = sadd.s32 1, %s294
          $region73: #{daspp_conv_branch.1} parent=66 // loop_footer_branch
            %293 = sbr.rel target = $region69
          $region74: #{daspp_conv_branch.1} parent=66 // loop_exit
            _
        $region67: #{daspp_conv_branch.1} parent=62 // pred_fallthru
          _
        // Predicated region
        $region75: #{daspp_conv_branch.1} parent=62 // pred_check
          _
        $region76: #{daspp_conv_branch.1} parent=62 // pred_check_branch
          %318 = sbr.rel target = $region78
        $region77: #{daspp_conv_branch.1} parent=62 // pred_region
          _
        $region78: #{daspp_conv_branch.1} parent=62 // pred_fallthru
          _
        // Predicated region
        $region79: #{daspp_conv_branch.1} parent=62 // pred_check
          _
        $region80: #{daspp_conv_branch.1} parent=62 // pred_check_branch
          %321 = sbr.rel (0) target = $region82
        $region81: #{daspp_conv_branch.1} parent=62 // pred_region
          %322 = vsyncadd %s290, 1024
        $region82: #{daspp_conv_branch.1} parent=62 // pred_fallthru
          _
      $region63: #{daspp_conv_branch.1} parent=35 // pred_fallthru
        _
      // Predicated region
      $region83: #{daspp_conv_branch.1} parent=35 // pred_check
        %p323 = pneg %p211
      $region84: #{daspp_conv_branch.1} parent=35 // pred_check_branch
        %325 = sbr.rel (%p323) target = $region86
      $region85: #{daspp_conv_branch.1} parent=35 // pred_region
        %s326 = smul.u32 4, 10
        %s327 = smul.u32 %s326, 2
        %s328 = smul.u32 %s327, 1
        %s329 = sshll.u32 %s328, 4
        %330 = dma.done [#allocation3], %s329
      $region86: #{daspp_conv_branch.1} parent=35 // pred_fallthru
        _
      %p331 = scmp.gt.s32.totalorder %s21, 0
      // Predicated region
      $region87: #{daspp_conv_branch.1} parent=35 // pred_check
        %p332 = pneg %p331
      $region88: #{daspp_conv_branch.1} parent=35 // pred_check_branch
        %334 = sbr.rel (%p332) target = $region90
      $region89: #{daspp_conv_branch.1} parent=35 // pred_region
        %s335 = scalar_lea.sflag [#allocation3], %s210
        %s336 = smul.u32 4, 8
        %s337 = smul.u32 %s336, 2
        %s338 = smul.u32 %s337, 1
        %s339 = sshll.u32 %s338, 4
        %340 = dma.done %s335, %s339
      $region90: #{daspp_conv_branch.1} parent=35 // pred_fallthru
        _
      // Predicated region
      $region91: #{daspp_conv_branch.1} parent=35 // pred_check
        %p341 = pneg %p211
      $region92: #{daspp_conv_branch.1} parent=35 // pred_check_branch
        %343 = sbr.rel (%p341) target = $region94
      $region93: #{daspp_conv_branch.1} parent=35 // pred_region
        %v344 = vld [vmem:[#allocation2] sm:$0xf]
        %v345 = vld [vmem:[#allocation2 + $0x4] sm:$0xf]
        %v346 = vld [vmem:[#allocation2 + $0x8] sm:$0xf]
        %v347 = vld [vmem:[#allocation2 + $0xc] sm:$0xf]
        %v348 = vld [vmem:[#allocation2 + $0x10] sm:$0xf]
        %v349 = vld [vmem:[#allocation2 + $0x14] sm:$0xf]
        %v350 = vld [vmem:[#allocation2 + $0x18] sm:$0xf]
        %v351 = vld [vmem:[#allocation2 + $0x1c] sm:$0xf]
        %v352 = vld [vmem:[#allocation2 + $0x20] sm:$0xf]
        %v353 = vld [vmem:[#allocation2 + $0x24] sm:$0xf]
        %v354 = vld [vmem:[#allocation2 + $0x28] sm:$0xf]
        %v355 = vld [vmem:[#allocation2 + $0x2c] sm:$0xf]
        %v356 = vld [vmem:[#allocation2 + $0x30] sm:$0xf]
        %v357 = vld [vmem:[#allocation2 + $0x34] sm:$0xf]
        %v358 = vld [vmem:[#allocation2 + $0x38] sm:$0xf]
        %v359 = vld [vmem:[#allocation2 + $0x3c] sm:$0xf]
        %v360 = vld [vmem:[#allocation2 + $0x40] sm:$0xf]
        %v361 = vld [vmem:[#allocation2 + $0x44] sm:$0xf]
        %v362 = vld [vmem:[#allocation2 + $0x48] sm:$0xf]
        %v363 = vld [vmem:[#allocation2 + $0x4c] sm:$0xf]
        %v364 = vld [vmem:[%s1] sm:$0xf]
        %v365 = vld [vmem:[%s1 + $0x4] sm:$0xf]
        %v366 = vld [vmem:[%s1 + $0x8] sm:$0xf]
        %v367 = vld [vmem:[%s1 + $0xc] sm:$0xf]
        %v368 = vld [vmem:[%s1 + $0x10] sm:$0xf]
        %v369 = vld [vmem:[%s1 + $0x14] sm:$0xf]
        %v370 = vld [vmem:[%s1 + $0x18] sm:$0xf]
        %v371 = vld [vmem:[%s1 + $0x1c] sm:$0xf]
        %v372 = vld [vmem:[%s1 + $0x20] sm:$0xf]
        %v373 = vld [vmem:[%s1 + $0x24] sm:$0xf]
        %v374 = vld [vmem:[%s1 + $0x28] sm:$0xf]
        %v375 = vld [vmem:[%s1 + $0x2c] sm:$0xf]
        %v376 = vld [vmem:[%s1 + $0x30] sm:$0xf]
        %v377 = vld [vmem:[%s1 + $0x34] sm:$0xf]
        %v378 = vld [vmem:[%s1 + $0x38] sm:$0xf]
        %v379 = vld [vmem:[%s1 + $0x3c] sm:$0xf]
        %v380 = vld [vmem:[%s2] sm:$0x1]
        %v382 = vperm.slane %v380, 0
        %v404 = vunpack.c.l.b16 %v344
        %v405 = vunpack.c.l.b16 %v345
        %v406 = vunpack.c.l.b16 %v346
        %v407 = vunpack.c.l.b16 %v347
        %v408 = vunpack.c.l.b16 %v348
        %v409 = vunpack.c.l.b16 %v349
        %v410 = vunpack.c.l.b16 %v350
        %v411 = vunpack.c.l.b16 %v351
        %v412 = vunpack.c.l.b16 %v352
        %v413 = vunpack.c.l.b16 %v353
        %v414 = vunpack.c.l.b16 %v354
        %v415 = vunpack.c.l.b16 %v355
        %v416 = vunpack.c.l.b16 %v356
        %v417 = vunpack.c.l.b16 %v357
        %v418 = vunpack.c.l.b16 %v358
        %v419 = vunpack.c.l.b16 %v359
        %v420 = vunpack.c.l.b16 %v360
        %v421 = vunpack.c.l.b16 %v361
        %v422 = vunpack.c.l.b16 %v362
        %v423 = vunpack.c.l.b16 %v363
        %v424 = vpack.c.b16 %v405, %v404
        %v425 = vpack.c.b16 %v407, %v406
        %v426 = vpack.c.b16 %v409, %v408
        %v427 = vpack.c.b16 %v411, %v410
        %v428 = vpack.c.b16 %v413, %v412
        %v429 = vpack.c.b16 %v415, %v414
        %v430 = vpack.c.b16 %v417, %v416
        %v431 = vpack.c.b16 %v419, %v418
        %v432 = vpack.c.b16 %v421, %v420
        %v433 = vpack.c.b16 %v423, %v422
        %v460 = vunpack.c.l.b16 %v364
        %v461 = vunpack.c.l.b16 %v365
        %v462 = vunpack.c.l.b16 %v366
        %v463 = vunpack.c.l.b16 %v367
        %v464 = vunpack.c.l.b16 %v368
        %v465 = vunpack.c.l.b16 %v369
        %v466 = vunpack.c.l.b16 %v370
        %v467 = vunpack.c.l.b16 %v371
        %v468 = vunpack.c.l.b16 %v372
        %v469 = vunpack.c.l.b16 %v373
        %v470 = vunpack.c.l.b16 %v374
        %v471 = vunpack.c.l.b16 %v375
        %v472 = vunpack.c.l.b16 %v376
        %v473 = vunpack.c.l.b16 %v377
        %v474 = vunpack.c.l.b16 %v378
        %v475 = vunpack.c.l.b16 %v379
        %v476 = vpack.c.b16 %v461, %v460
        %v477 = vpack.c.b16 %v463, %v462
        %v478 = vpack.c.b16 %v465, %v464
        %v479 = vpack.c.b16 %v467, %v466
        %v480 = vpack.c.b16 %v469, %v468
        %v481 = vpack.c.b16 %v471, %v470
        %v482 = vpack.c.b16 %v473, %v472
        %v483 = vpack.c.b16 %v475, %v474
        %492 = vmatpush.bf16.msra.mxu0 %v483
        %493 = vmatpush.bf16.msra.mxu0 %v482
        %494 = vmatpush.bf16.msra.mxu0 %v481
        %495 = vmatpush.bf16.msra.mxu0 %v480
        %496 = vmatpush.bf16.msra.mxu0 %v479
        %497 = vmatpush.bf16.msra.mxu0 %v478
        %498 = vmatpush.bf16.msra.mxu0 %v477
        %499 = vmatpush.bf16.msra.mxu0 %v476
        %500 = vmatmul.bf16.gmra.mxu0 %v424
        %v501 = vpop.f32.mrf.mxu0
        %v502 = vadd.f32 %v382, %v501
        %v503 = vpop.f32.mrf.mxu0
        %v504 = vadd.f32 %v382, %v503
        %505 = vmatmul.bf16.gmra.mxu0 %v425
        %v506 = vpop.f32.mrf.mxu0
        %v507 = vadd.f32 %v382, %v506
        %v508 = vpop.f32.mrf.mxu0
        %v509 = vadd.f32 %v382, %v508
        %510 = vmatmul.bf16.gmra.mxu0 %v426
        %v511 = vpop.f32.mrf.mxu0
        %v512 = vadd.f32 %v382, %v511
        %v513 = vpop.f32.mrf.mxu0
        %v514 = vadd.f32 %v382, %v513
        %515 = vmatmul.bf16.gmra.mxu0 %v427
        %v516 = vpop.f32.mrf.mxu0
        %v517 = vadd.f32 %v382, %v516
        %v518 = vpop.f32.mrf.mxu0
        %v519 = vadd.f32 %v382, %v518
        %520 = vmatmul.bf16.gmra.mxu0 %v428
        %v521 = vpop.f32.mrf.mxu0
        %v522 = vadd.f32 %v382, %v521
        %v523 = vpop.f32.mrf.mxu0
        %v524 = vadd.f32 %v382, %v523
        %525 = vmatmul.bf16.gmra.mxu0 %v429
        %v526 = vpop.f32.mrf.mxu0
        %v527 = vadd.f32 %v382, %v526
        %v528 = vpop.f32.mrf.mxu0
        %v529 = vadd.f32 %v382, %v528
        %530 = vmatmul.bf16.gmra.mxu0 %v430
        %v531 = vpop.f32.mrf.mxu0
        %v532 = vadd.f32 %v382, %v531
        %v533 = vpop.f32.mrf.mxu0
        %v534 = vadd.f32 %v382, %v533
        %535 = vmatmul.bf16.gmra.mxu0 %v431
        %v536 = vpop.f32.mrf.mxu0
        %v537 = vadd.f32 %v382, %v536
        %v538 = vpop.f32.mrf.mxu0
        %v539 = vadd.f32 %v382, %v538
        %540 = vmatmul.bf16.gmra.mxu0 %v432
        %v541 = vpop.f32.mrf.mxu0
        %v542 = vadd.f32 %v382, %v541
        %v543 = vpop.f32.mrf.mxu0
        %v544 = vadd.f32 %v382, %v543
        %545 = vmatmul.bf16.gmra.mxu0 %v433
        %v546 = vpop.f32.mrf.mxu0
        %v547 = vadd.f32 %v382, %v546
        %v548 = vpop.f32.mrf.mxu0
        %v549 = vadd.f32 %v382, %v548
        %550 = vdwg.mxu0
        %v551 = vmax.f32 %v502, 0.0
        %v552 = vmax.f32 %v504, 0.0
        %v553 = vmax.f32 %v507, 0.0
        %v554 = vmax.f32 %v509, 0.0
        %v555 = vmax.f32 %v512, 0.0
        %v556 = vmax.f32 %v514, 0.0
        %v557 = vmax.f32 %v517, 0.0
        %v558 = vmax.f32 %v519, 0.0
        %v559 = vmax.f32 %v522, 0.0
        %v560 = vmax.f32 %v524, 0.0
        %v561 = vmax.f32 %v527, 0.0
        %v562 = vmax.f32 %v529, 0.0
        %v563 = vmax.f32 %v532, 0.0
        %v564 = vmax.f32 %v534, 0.0
        %v565 = vmax.f32 %v537, 0.0
        %v566 = vmax.f32 %v539, 0.0
        %v567 = vmax.f32 %v542, 0.0
        %v568 = vmax.f32 %v544, 0.0
        %v569 = vmax.f32 %v547, 0.0
        %v570 = vmax.f32 %v549, 0.0
        %v571 = vpack.c.bf16 %v551, %v551
        %v572 = vpack.c.bf16 %v552, %v552
        %v573 = vpack.c.bf16 %v553, %v553
        %v574 = vpack.c.bf16 %v554, %v554
        %v575 = vpack.c.bf16 %v555, %v555
        %v576 = vpack.c.bf16 %v556, %v556
        %v577 = vpack.c.bf16 %v557, %v557
        %v578 = vpack.c.bf16 %v558, %v558
        %v579 = vpack.c.bf16 %v559, %v559
        %v580 = vpack.c.bf16 %v560, %v560
        %v581 = vpack.c.bf16 %v561, %v561
        %v582 = vpack.c.bf16 %v562, %v562
        %v583 = vpack.c.bf16 %v563, %v563
        %v584 = vpack.c.bf16 %v564, %v564
        %v585 = vpack.c.bf16 %v565, %v565
        %v586 = vpack.c.bf16 %v566, %v566
        %v587 = vpack.c.bf16 %v567, %v567
        %v588 = vpack.c.bf16 %v568, %v568
        %v589 = vpack.c.bf16 %v569, %v569
        %v590 = vpack.c.bf16 %v570, %v570
        %591 = vst [vmem:[#allocation4 + $0x4] sm:$0xf] %v571
        %592 = vst [vmem:[#allocation4 + $0x8] sm:$0xf] %v572
        %593 = vst [vmem:[#allocation4 + $0x14] sm:$0xf] %v573
        %594 = vst [vmem:[#allocation4 + $0x18] sm:$0xf] %v574
        %595 = vst [vmem:[#allocation4 + $0x24] sm:$0xf] %v575
        %596 = vst [vmem:[#allocation4 + $0x28] sm:$0xf] %v576
        %597 = vst [vmem:[#allocation4 + $0x34] sm:$0xf] %v577
        %598 = vst [vmem:[#allocation4 + $0x38] sm:$0xf] %v578
        %599 = vst [vmem:[#allocation4 + $0x44] sm:$0xf] %v579
        %600 = vst [vmem:[#allocation4 + $0x48] sm:$0xf] %v580
        %601 = vst [vmem:[#allocation4 + $0x54] sm:$0xf] %v581
        %602 = vst [vmem:[#allocation4 + $0x58] sm:$0xf] %v582
        %603 = vst [vmem:[#allocation4 + $0x64] sm:$0xf] %v583
        %604 = vst [vmem:[#allocation4 + $0x68] sm:$0xf] %v584
        %605 = vst [vmem:[#allocation4 + $0x74] sm:$0xf] %v585
        %606 = vst [vmem:[#allocation4 + $0x78] sm:$0xf] %v586
        %607 = vst [vmem:[#allocation4 + $0x84] sm:$0xf] %v587
        %608 = vst [vmem:[#allocation4 + $0x88] sm:$0xf] %v588
        %609 = vst [vmem:[#allocation4 + $0x94] sm:$0xf] %v589
        %610 = vst [vmem:[#allocation4 + $0x98] sm:$0xf] %v590
        %611 = vst [vmem:[#allocation4] sm:$0xf] 0
        %612 = vst [vmem:[#allocation4 + $0x4] sm:$0xf] 0
        %613 = vst [vmem:[#allocation4 + $0x8] sm:$0xf] 0
        %614 = vst [vmem:[#allocation4 + $0xc] sm:$0xf] 0
      $region94: #{daspp_conv_branch.1} parent=35 // pred_fallthru
        _
      // Predicated region
      $region95: #{daspp_conv_branch.1} parent=35 // pred_check
        %p615 = pneg %p331
      $region96: #{daspp_conv_branch.1} parent=35 // pred_check_branch
        %617 = sbr.rel (%p615) target = $region98
      $region97: #{daspp_conv_branch.1} parent=35 // pred_region
        %s618 = scalar_lea.vmem [#allocation4], 128
        %v619 = vld [vmem:[%s618] sm:$0xf]
        %v620 = vld [vmem:[%s618 + $0x4] sm:$0xf]
        %v621 = vld [vmem:[%s618 + $0x8] sm:$0xf]
        %v622 = vld [vmem:[%s618 + $0xc] sm:$0xf]
        %v623 = vld [vmem:[%s618 + $0x10] sm:$0xf]
        %v624 = vld [vmem:[%s618 + $0x14] sm:$0xf]
        %v625 = vld [vmem:[%s618 + $0x18] sm:$0xf]
        %v626 = vld [vmem:[%s618 + $0x1c] sm:$0xf]
        %627 = vst [vmem:[#allocation4] sm:$0xf] %v619
        %628 = vst [vmem:[#allocation4 + $0x4] sm:$0xf] %v620
        %629 = vst [vmem:[#allocation4 + $0x8] sm:$0xf] %v621
        %630 = vst [vmem:[#allocation4 + $0xc] sm:$0xf] %v622
        %631 = vst [vmem:[#allocation4 + $0x10] sm:$0xf] %v623
        %632 = vst [vmem:[#allocation4 + $0x14] sm:$0xf] %v624
        %633 = vst [vmem:[#allocation4 + $0x18] sm:$0xf] %v625
        %634 = vst [vmem:[#allocation4 + $0x1c] sm:$0xf] %v626
        %s635 = smul.u32 %s210, 20
        %s636 = smul.addr %s635, 4
        %s637 = scalar_lea.vmem [#allocation2], %s636
        %v638 = vld [vmem:[%s637] sm:$0xf]
        %v639 = vld [vmem:[%s637 + $0x4] sm:$0xf]
        %v640 = vld [vmem:[%s637 + $0x8] sm:$0xf]
        %v641 = vld [vmem:[%s637 + $0xc] sm:$0xf]
        %v642 = vld [vmem:[%s637 + $0x10] sm:$0xf]
        %v643 = vld [vmem:[%s637 + $0x14] sm:$0xf]
        %v644 = vld [vmem:[%s637 + $0x18] sm:$0xf]
        %v645 = vld [vmem:[%s637 + $0x1c] sm:$0xf]
        %v646 = vld [vmem:[%s637 + $0x20] sm:$0xf]
        %v647 = vld [vmem:[%s637 + $0x24] sm:$0xf]
        %v648 = vld [vmem:[%s637 + $0x28] sm:$0xf]
        %v649 = vld [vmem:[%s637 + $0x2c] sm:$0xf]
        %v650 = vld [vmem:[%s637 + $0x30] sm:$0xf]
        %v651 = vld [vmem:[%s637 + $0x34] sm:$0xf]
        %v652 = vld [vmem:[%s637 + $0x38] sm:$0xf]
        %v653 = vld [vmem:[%s637 + $0x3c] sm:$0xf]
        %v654 = vld [vmem:[%s1] sm:$0xf]
        %v655 = vld [vmem:[%s1 + $0x4] sm:$0xf]
        %v656 = vld [vmem:[%s1 + $0x8] sm:$0xf]
        %v657 = vld [vmem:[%s1 + $0xc] sm:$0xf]
        %v658 = vld [vmem:[%s1 + $0x10] sm:$0xf]
        %v659 = vld [vmem:[%s1 + $0x14] sm:$0xf]
        %v660 = vld [vmem:[%s1 + $0x18] sm:$0xf]
        %v661 = vld [vmem:[%s1 + $0x1c] sm:$0xf]
        %v662 = vld [vmem:[%s1 + $0x20] sm:$0xf]
        %v663 = vld [vmem:[%s1 + $0x24] sm:$0xf]
        %v664 = vld [vmem:[%s1 + $0x28] sm:$0xf]
        %v665 = vld [vmem:[%s1 + $0x2c] sm:$0xf]
        %v666 = vld [vmem:[%s1 + $0x30] sm:$0xf]
        %v667 = vld [vmem:[%s1 + $0x34] sm:$0xf]
        %v668 = vld [vmem:[%s1 + $0x38] sm:$0xf]
        %v669 = vld [vmem:[%s1 + $0x3c] sm:$0xf]
        %v670 = vld [vmem:[%s2] sm:$0x1]
        %v672 = vperm.slane %v670, 0
        %v690 = vunpack.c.l.b16 %v638
        %v691 = vunpack.c.l.b16 %v639
        %v692 = vunpack.c.l.b16 %v640
        %v693 = vunpack.c.l.b16 %v641
        %v694 = vunpack.c.l.b16 %v642
        %v695 = vunpack.c.l.b16 %v643
        %v696 = vunpack.c.l.b16 %v644
        %v697 = vunpack.c.l.b16 %v645
        %v698 = vunpack.c.l.b16 %v646
        %v699 = vunpack.c.l.b16 %v647
        %v700 = vunpack.c.l.b16 %v648
        %v701 = vunpack.c.l.b16 %v649
        %v702 = vunpack.c.l.b16 %v650
        %v703 = vunpack.c.l.b16 %v651
        %v704 = vunpack.c.l.b16 %v652
        %v705 = vunpack.c.l.b16 %v653
        %v706 = vpack.c.b16 %v691, %v690
        %v707 = vpack.c.b16 %v693, %v692
        %v708 = vpack.c.b16 %v695, %v694
        %v709 = vpack.c.b16 %v697, %v696
        %v710 = vpack.c.b16 %v699, %v698
        %v711 = vpack.c.b16 %v701, %v700
        %v712 = vpack.c.b16 %v703, %v702
        %v713 = vpack.c.b16 %v705, %v704
        %v738 = vunpack.c.l.b16 %v654
        %v739 = vunpack.c.l.b16 %v655
        %v740 = vunpack.c.l.b16 %v656
        %v741 = vunpack.c.l.b16 %v657
        %v742 = vunpack.c.l.b16 %v658
        %v743 = vunpack.c.l.b16 %v659
        %v744 = vunpack.c.l.b16 %v660
        %v745 = vunpack.c.l.b16 %v661
        %v746 = vunpack.c.l.b16 %v662
        %v747 = vunpack.c.l.b16 %v663
        %v748 = vunpack.c.l.b16 %v664
        %v749 = vunpack.c.l.b16 %v665
        %v750 = vunpack.c.l.b16 %v666
        %v751 = vunpack.c.l.b16 %v667
        %v752 = vunpack.c.l.b16 %v668
        %v753 = vunpack.c.l.b16 %v669
        %v754 = vpack.c.b16 %v739, %v738
        %v755 = vpack.c.b16 %v741, %v740
        %v756 = vpack.c.b16 %v743, %v742
        %v757 = vpack.c.b16 %v745, %v744
        %v758 = vpack.c.b16 %v747, %v746
        %v759 = vpack.c.b16 %v749, %v748
        %v760 = vpack.c.b16 %v751, %v750
        %v761 = vpack.c.b16 %v753, %v752
        %770 = vmatpush.bf16.msra.mxu0 %v761
        %771 = vmatpush.bf16.msra.mxu0 %v760
        %772 = vmatpush.bf16.msra.mxu0 %v759
        %773 = vmatpush.bf16.msra.mxu0 %v758
        %774 = vmatpush.bf16.msra.mxu0 %v757
        %775 = vmatpush.bf16.msra.mxu0 %v756
        %776 = vmatpush.bf16.msra.mxu0 %v755
        %777 = vmatpush.bf16.msra.mxu0 %v754
        %778 = vmatmul.bf16.gmra.mxu0 %v706
        %v779 = vpop.f32.mrf.mxu0
        %v780 = vadd.f32 %v672, %v779
        %v781 = vpop.f32.mrf.mxu0
        %v782 = vadd.f32 %v672, %v781
        %783 = vmatmul.bf16.gmra.mxu0 %v707
        %v784 = vpop.f32.mrf.mxu0
        %v785 = vadd.f32 %v672, %v784
        %v786 = vpop.f32.mrf.mxu0
        %v787 = vadd.f32 %v672, %v786
        %788 = vmatmul.bf16.gmra.mxu0 %v708
        %v789 = vpop.f32.mrf.mxu0
        %v790 = vadd.f32 %v672, %v789
        %v791 = vpop.f32.mrf.mxu0
        %v792 = vadd.f32 %v672, %v791
        %793 = vmatmul.bf16.gmra.mxu0 %v709
        %v794 = vpop.f32.mrf.mxu0
        %v795 = vadd.f32 %v672, %v794
        %v796 = vpop.f32.mrf.mxu0
        %v797 = vadd.f32 %v672, %v796
        %798 = vmatmul.bf16.gmra.mxu0 %v710
        %v799 = vpop.f32.mrf.mxu0
        %v800 = vadd.f32 %v672, %v799
        %v801 = vpop.f32.mrf.mxu0
        %v802 = vadd.f32 %v672, %v801
        %803 = vmatmul.bf16.gmra.mxu0 %v711
        %v804 = vpop.f32.mrf.mxu0
        %v805 = vadd.f32 %v672, %v804
        %v806 = vpop.f32.mrf.mxu0
        %v807 = vadd.f32 %v672, %v806
        %808 = vmatmul.bf16.gmra.mxu0 %v712
        %v809 = vpop.f32.mrf.mxu0
        %v810 = vadd.f32 %v672, %v809
        %v811 = vpop.f32.mrf.mxu0
        %v812 = vadd.f32 %v672, %v811
        %813 = vmatmul.bf16.gmra.mxu0 %v713
        %v814 = vpop.f32.mrf.mxu0
        %v815 = vadd.f32 %v672, %v814
        %v816 = vpop.f32.mrf.mxu0
        %v817 = vadd.f32 %v672, %v816
        %818 = vdwg.mxu0
        %v819 = vmax.f32 %v780, 0.0
        %v820 = vmax.f32 %v782, 0.0
        %v821 = vmax.f32 %v785, 0.0
        %v822 = vmax.f32 %v787, 0.0
        %v823 = vmax.f32 %v790, 0.0
        %v824 = vmax.f32 %v792, 0.0
        %v825 = vmax.f32 %v795, 0.0
        %v826 = vmax.f32 %v797, 0.0
        %v827 = vmax.f32 %v800, 0.0
        %v828 = vmax.f32 %v802, 0.0
        %v829 = vmax.f32 %v805, 0.0
        %v830 = vmax.f32 %v807, 0.0
        %v831 = vmax.f32 %v810, 0.0
        %v832 = vmax.f32 %v812, 0.0
        %v833 = vmax.f32 %v815, 0.0
        %v834 = vmax.f32 %v817, 0.0
        %v835 = vpack.c.bf16 %v819, %v819
        %v836 = vpack.c.bf16 %v820, %v820
        %v837 = vpack.c.bf16 %v821, %v821
        %v838 = vpack.c.bf16 %v822, %v822
        %v839 = vpack.c.bf16 %v823, %v823
        %v840 = vpack.c.bf16 %v824, %v824
        %v841 = vpack.c.bf16 %v825, %v825
        %v842 = vpack.c.bf16 %v826, %v826
        %v843 = vpack.c.bf16 %v827, %v827
        %v844 = vpack.c.bf16 %v828, %v828
        %v845 = vpack.c.bf16 %v829, %v829
        %v846 = vpack.c.bf16 %v830, %v830
        %v847 = vpack.c.bf16 %v831, %v831
        %v848 = vpack.c.bf16 %v832, %v832
        %v849 = vpack.c.bf16 %v833, %v833
        %v850 = vpack.c.bf16 %v834, %v834
        %s851 = scalar_lea.vmem [#allocation4], 32
        %852 = vst [vmem:[%s851 + $0x4] sm:$0xf] %v835
        %853 = vst [vmem:[%s851 + $0x8] sm:$0xf] %v836
        %854 = vst [vmem:[%s851 + $0x14] sm:$0xf] %v837
        %855 = vst [vmem:[%s851 + $0x18] sm:$0xf] %v838
        %856 = vst [vmem:[%s851 + $0x24] sm:$0xf] %v839
        %857 = vst [vmem:[%s851 + $0x28] sm:$0xf] %v840
        %858 = vst [vmem:[%s851 + $0x34] sm:$0xf] %v841
        %859 = vst [vmem:[%s851 + $0x38] sm:$0xf] %v842
        %860 = vst [vmem:[%s851 + $0x44] sm:$0xf] %v843
        %861 = vst [vmem:[%s851 + $0x48] sm:$0xf] %v844
        %862 = vst [vmem:[%s851 + $0x54] sm:$0xf] %v845
        %863 = vst [vmem:[%s851 + $0x58] sm:$0xf] %v846
        %864 = vst [vmem:[%s851 + $0x64] sm:$0xf] %v847
        %865 = vst [vmem:[%s851 + $0x68] sm:$0xf] %v848
        %866 = vst [vmem:[%s851 + $0x74] sm:$0xf] %v849
        %867 = vst [vmem:[%s851 + $0x78] sm:$0xf] %v850
      $region98: #{daspp_conv_branch.1} parent=35 // pred_fallthru
        _
      %p868 = scmp.eq.s32.totalorder %s21, 2
      // Predicated region
      $region99: #{daspp_conv_branch.1} parent=35 // pred_check
        %p869 = pneg %p868
      $region100: #{daspp_conv_branch.1} parent=35 // pred_check_branch
        %871 = sbr.rel (%p869) target = $region102
      $region101: #{daspp_conv_branch.1} parent=35 // pred_region
        %s872 = scalar_lea.vmem [#allocation4], 144
        %873 = vst [vmem:[%s872] sm:$0xf] 0
        %874 = vst [vmem:[%s872 + $0x4] sm:$0xf] 0
        %875 = vst [vmem:[%s872 + $0x8] sm:$0xf] 0
        %876 = vst [vmem:[%s872 + $0xc] sm:$0xf] 0
      $region102: #{daspp_conv_branch.1} parent=35 // pred_fallthru
        _
      %v877 = vld [vmem:[#allocation4] sm:$0xf]
      %v878 = vld [vmem:[#allocation4 + $0x4] sm:$0xf]
      %v879 = vld [vmem:[#allocation4 + $0x8] sm:$0xf]
      %v880 = vld [vmem:[#allocation4 + $0xc] sm:$0xf]
      %v881 = vld [vmem:[#allocation4 + $0x10] sm:$0xf]
      %v882 = vld [vmem:[#allocation4 + $0x14] sm:$0xf]
      %v883 = vld [vmem:[#allocation4 + $0x18] sm:$0xf]
      %v884 = vld [vmem:[#allocation4 + $0x1c] sm:$0xf]
      %v885 = vld [vmem:[#allocation4 + $0x20] sm:$0xf]
      %v886 = vld [vmem:[#allocation4 + $0x24] sm:$0xf]
      %v887 = vld [vmem:[#allocation4 + $0x28] sm:$0xf]
      %v888 = vld [vmem:[#allocation4 + $0x2c] sm:$0xf]
      %v889 = vld [vmem:[#allocation4 + $0x30] sm:$0xf]
      %v890 = vld [vmem:[#allocation4 + $0x34] sm:$0xf]
      %v891 = vld [vmem:[#allocation4 + $0x38] sm:$0xf]
      %v892 = vld [vmem:[#allocation4 + $0x3c] sm:$0xf]
      %v893 = vld [vmem:[#allocation4 + $0x40] sm:$0xf]
      %v894 = vld [vmem:[#allocation4 + $0x44] sm:$0xf]
      %v895 = vld [vmem:[#allocation4 + $0x48] sm:$0xf]
      %v896 = vld [vmem:[#allocation4 + $0x4c] sm:$0xf]
      %v897 = vld [vmem:[#allocation4 + $0x50] sm:$0xf]
      %v898 = vld [vmem:[#allocation4 + $0x54] sm:$0xf]
      %v899 = vld [vmem:[#allocation4 + $0x58] sm:$0xf]
      %v900 = vld [vmem:[#allocation4 + $0x5c] sm:$0xf]
      %v901 = vld [vmem:[#allocation4 + $0x60] sm:$0xf]
      %v902 = vld [vmem:[#allocation4 + $0x64] sm:$0xf]
      %v903 = vld [vmem:[#allocation4 + $0x68] sm:$0xf]
      %v904 = vld [vmem:[#allocation4 + $0x6c] sm:$0xf]
      %v905 = vld [vmem:[#allocation4 + $0x70] sm:$0xf]
      %v906 = vld [vmem:[#allocation4 + $0x74] sm:$0xf]
      %v907 = vld [vmem:[#allocation4 + $0x78] sm:$0xf]
      %v908 = vld [vmem:[#allocation4 + $0x7c] sm:$0xf]
      %v909 = vld [vmem:[#allocation4 + $0x80] sm:$0xf]
      %v910 = vld [vmem:[#allocation4 + $0x84] sm:$0xf]
      %v911 = vld [vmem:[#allocation4 + $0x88] sm:$0xf]
      %v912 = vld [vmem:[#allocation4 + $0x8c] sm:$0xf]
      %v913 = vld [vmem:[#allocation4 + $0x90] sm:$0xf]
      %v914 = vld [vmem:[#allocation4 + $0x94] sm:$0xf]
      %v915 = vld [vmem:[#allocation4 + $0x98] sm:$0xf]
      %v916 = vld [vmem:[#allocation4 + $0x9c] sm:$0xf]
      %v947 = vunpack.c.l.b16 %v877
      %v948 = vunpack.c.l.b16 %v878
      %v949 = vunpack.c.l.b16 %v879
      %v950 = vunpack.c.l.b16 %v881
      %v951 = vunpack.c.l.b16 %v882
      %v952 = vunpack.c.l.b16 %v883
      %v953 = vunpack.c.l.b16 %v885
      %v954 = vunpack.c.l.b16 %v886
      %v955 = vunpack.c.l.b16 %v887
      %v956 = vunpack.c.l.b16 %v889
      %v957 = vunpack.c.l.b16 %v890
      %v958 = vunpack.c.l.b16 %v891
      %v959 = vunpack.c.l.b16 %v893
      %v960 = vunpack.c.l.b16 %v894
      %v961 = vunpack.c.l.b16 %v895
      %v962 = vunpack.c.l.b16 %v897
      %v963 = vunpack.c.l.b16 %v898
      %v964 = vunpack.c.l.b16 %v899
      %v965 = vunpack.c.l.b16 %v901
      %v966 = vunpack.c.l.b16 %v902
      %v967 = vunpack.c.l.b16 %v903
      %v968 = vunpack.c.l.b16 %v905
      %v969 = vunpack.c.l.b16 %v906
      %v970 = vunpack.c.l.b16 %v907
      %v971 = vunpack.c.l.b16 %v909
      %v972 = vunpack.c.l.b16 %v910
      %v973 = vunpack.c.l.b16 %v911
      %v974 = vunpack.c.l.b16 %v913
      %v975 = vunpack.c.l.b16 %v914
      %v976 = vunpack.c.l.b16 %v915
      %v977 = vpack.c.b16 %v948, %v947
      %v978 = vpack.c.b16 %v949, %v949
      %v979 = vpack.c.b16 %v951, %v950
      %v980 = vpack.c.b16 %v952, %v952
      %v981 = vpack.c.b16 %v954, %v953
      %v982 = vpack.c.b16 %v955, %v955
      %v983 = vpack.c.b16 %v957, %v956
      %v984 = vpack.c.b16 %v958, %v958
      %v985 = vpack.c.b16 %v960, %v959
      %v986 = vpack.c.b16 %v961, %v961
      %v987 = vpack.c.b16 %v963, %v962
      %v988 = vpack.c.b16 %v964, %v964
      %v989 = vpack.c.b16 %v966, %v965
      %v990 = vpack.c.b16 %v967, %v967
      %v991 = vpack.c.b16 %v969, %v968
      %v992 = vpack.c.b16 %v970, %v970
      %v993 = vpack.c.b16 %v972, %v971
      %v994 = vpack.c.b16 %v973, %v973
      %v995 = vpack.c.b16 %v975, %v974
      %v996 = vpack.c.b16 %v976, %v976
      %v997 = vpack.c.b16 %v949, %v948
      %v998 = vpack.c.b16 %v952, %v951
      %v999 = vpack.c.b16 %v955, %v954
      %v1000 = vpack.c.b16 %v958, %v957
      %v1001 = vpack.c.b16 %v961, %v960
      %v1002 = vpack.c.b16 %v964, %v963
      %v1003 = vpack.c.b16 %v967, %v966
      %v1004 = vpack.c.b16 %v970, %v969
      %v1005 = vpack.c.b16 %v973, %v972
      %v1006 = vpack.c.b16 %v976, %v975
      %v1008 = vshrl.u32 %v997, 16
      %v1010 = vrot.slane %v1008, 4
      %v1011 = vshll.u32 %v997, 16
      %v1013 = vrot.slane %v1011, 5
      %v1014 = vor.u32 %v1010, %v1013
      %v1016 = vshrl.u32 %v998, 16
      %v1018 = vrot.slane %v1016, 4
      %v1019 = vshll.u32 %v998, 16
      %v1021 = vrot.slane %v1019, 5
      %v1022 = vor.u32 %v1018, %v1021
      %v1024 = vshrl.u32 %v999, 16
      %v1026 = vrot.slane %v1024, 4
      %v1027 = vshll.u32 %v999, 16
      %v1029 = vrot.slane %v1027, 5
      %v1030 = vor.u32 %v1026, %v1029
      %v1032 = vshrl.u32 %v1000, 16
      %v1034 = vrot.slane %v1032, 4
      %v1035 = vshll.u32 %v1000, 16
      %v1037 = vrot.slane %v1035, 5
      %v1038 = vor.u32 %v1034, %v1037
      %v1040 = vshrl.u32 %v1001, 16
      %v1042 = vrot.slane %v1040, 4
      %v1043 = vshll.u32 %v1001, 16
      %v1045 = vrot.slane %v1043, 5
      %v1046 = vor.u32 %v1042, %v1045
      %v1048 = vshrl.u32 %v1002, 16
      %v1050 = vrot.slane %v1048, 4
      %v1051 = vshll.u32 %v1002, 16
      %v1053 = vrot.slane %v1051, 5
      %v1054 = vor.u32 %v1050, %v1053
      %v1056 = vshrl.u32 %v1003, 16
      %v1058 = vrot.slane %v1056, 4
      %v1059 = vshll.u32 %v1003, 16
      %v1061 = vrot.slane %v1059, 5
      %v1062 = vor.u32 %v1058, %v1061
      %v1064 = vshrl.u32 %v1004, 16
      %v1066 = vrot.slane %v1064, 4
      %v1067 = vshll.u32 %v1004, 16
      %v1069 = vrot.slane %v1067, 5
      %v1070 = vor.u32 %v1066, %v1069
      %v1072 = vshrl.u32 %v1005, 16
      %v1074 = vrot.slane %v1072, 4
      %v1075 = vshll.u32 %v1005, 16
      %v1077 = vrot.slane %v1075, 5
      %v1078 = vor.u32 %v1074, %v1077
      %v1080 = vshrl.u32 %v1006, 16
      %v1082 = vrot.slane %v1080, 4
      %v1083 = vshll.u32 %v1006, 16
      %v1085 = vrot.slane %v1083, 5
      %v1086 = vor.u32 %v1082, %v1085
      %v1097 = vunpack.c.l.b16 %v880
      %v1098 = vunpack.c.l.b16 %v884
      %v1099 = vunpack.c.l.b16 %v888
      %v1100 = vunpack.c.l.b16 %v892
      %v1101 = vunpack.c.l.b16 %v896
      %v1102 = vunpack.c.l.b16 %v900
      %v1103 = vunpack.c.l.b16 %v904
      %v1104 = vunpack.c.l.b16 %v908
      %v1105 = vunpack.c.l.b16 %v912
      %v1106 = vunpack.c.l.b16 %v916
      %v1107 = vpack.c.b16 %v1097, %v1097
      %v1108 = vpack.c.b16 %v1098, %v1098
      %v1109 = vpack.c.b16 %v1099, %v1099
      %v1110 = vpack.c.b16 %v1100, %v1100
      %v1111 = vpack.c.b16 %v1101, %v1101
      %v1112 = vpack.c.b16 %v1102, %v1102
      %v1113 = vpack.c.b16 %v1103, %v1103
      %v1114 = vpack.c.b16 %v1104, %v1104
      %v1115 = vpack.c.b16 %v1105, %v1105
      %v1116 = vpack.c.b16 %v1106, %v1106
      %vm1117 = vcmask 1042432
      %v1118 = vrot.slane %v997, 5
      %v1119 = vrot.slane %v1107, 5
      %v1120 = vsel %vm1117, %v1118, %v1119
      %v1121 = vrot.slane %v998, 5
      %v1122 = vrot.slane %v1108, 5
      %v1123 = vsel %vm1117, %v1121, %v1122
      %v1124 = vrot.slane %v999, 5
      %v1125 = vrot.slane %v1109, 5
      %v1126 = vsel %vm1117, %v1124, %v1125
      %v1127 = vrot.slane %v1000, 5
      %v1128 = vrot.slane %v1110, 5
      %v1129 = vsel %vm1117, %v1127, %v1128
      %v1130 = vrot.slane %v1001, 5
      %v1131 = vrot.slane %v1111, 5
      %v1132 = vsel %vm1117, %v1130, %v1131
      %v1133 = vrot.slane %v1002, 5
      %v1134 = vrot.slane %v1112, 5
      %v1135 = vsel %vm1117, %v1133, %v1134
      %v1136 = vrot.slane %v1003, 5
      %v1137 = vrot.slane %v1113, 5
      %v1138 = vsel %vm1117, %v1136, %v1137
      %v1139 = vrot.slane %v1004, 5
      %v1140 = vrot.slane %v1114, 5
      %v1141 = vsel %vm1117, %v1139, %v1140
      %v1142 = vrot.slane %v1005, 5
      %v1143 = vrot.slane %v1115, 5
      %v1144 = vsel %vm1117, %v1142, %v1143
      %v1145 = vrot.slane %v1006, 5
      %v1146 = vrot.slane %v1116, 5
      %v1147 = vsel %vm1117, %v1145, %v1146
      %v1148 = vld [vmem:[%s3] sm:$0xf]
      %v1149 = vld [vmem:[%s3 + $0x4] sm:$0xf]
      %v1150 = vld [vmem:[%s3 + $0x8] sm:$0xf]
      %v1151 = vld [vmem:[%s3 + $0xc] sm:$0xf]
      %v1152 = vld [vmem:[%s3 + $0x10] sm:$0xf]
      %v1153 = vld [vmem:[%s3 + $0x14] sm:$0xf]
      %v1154 = vld [vmem:[%s3 + $0x18] sm:$0xf]
      %v1155 = vld [vmem:[%s3 + $0x1c] sm:$0xf]
      %v1156 = vld [vmem:[%s3 + $0x20] sm:$0xf]
      %v1157 = vld [vmem:[%s3 + $0x24] sm:$0xf]
      %v1158 = vld [vmem:[%s3 + $0x28] sm:$0xf]
      %v1159 = vld [vmem:[%s3 + $0x2c] sm:$0xf]
      %v1160 = vld [vmem:[%s3 + $0x30] sm:$0xf]
      %v1161 = vld [vmem:[%s3 + $0x34] sm:$0xf]
      %v1162 = vld [vmem:[%s3 + $0x38] sm:$0xf]
      %v1163 = vld [vmem:[%s3 + $0x3c] sm:$0xf]
      %v1164 = vld [vmem:[%s3 + $0x40] sm:$0xf]
      %v1165 = vld [vmem:[%s3 + $0x44] sm:$0xf]
      %v1166 = vld [vmem:[%s3 + $0x48] sm:$0xf]
      %v1167 = vld [vmem:[%s3 + $0x4c] sm:$0xf]
      %v1168 = vld [vmem:[%s3 + $0x50] sm:$0xf]
      %v1169 = vld [vmem:[%s3 + $0x54] sm:$0xf]
      %v1170 = vld [vmem:[%s3 + $0x58] sm:$0xf]
      %v1171 = vld [vmem:[%s3 + $0x5c] sm:$0xf]
      %v1172 = vld [vmem:[%s3 + $0x60] sm:$0xf]
      %v1173 = vld [vmem:[%s3 + $0x64] sm:$0xf]
      %v1174 = vld [vmem:[%s3 + $0x68] sm:$0xf]
      %v1175 = vld [vmem:[%s3 + $0x6c] sm:$0xf]
      %v1176 = vld [vmem:[%s3 + $0x70] sm:$0xf]
      %v1177 = vld [vmem:[%s3 + $0x74] sm:$0xf]
      %v1178 = vld [vmem:[%s3 + $0x78] sm:$0xf]
      %v1179 = vld [vmem:[%s3 + $0x7c] sm:$0xf]
      %v1180 = vld [vmem:[%s3 + $0x80] sm:$0xf]
      %v1181 = vld [vmem:[%s3 + $0x84] sm:$0xf]
      %v1182 = vld [vmem:[%s3 + $0x88] sm:$0xf]
      %v1183 = vld [vmem:[%s3 + $0x8c] sm:$0xf]
      %v1184 = vld [vmem:[%s3 + $0x90] sm:$0xf]
      %v1185 = vld [vmem:[%s3 + $0x94] sm:$0xf]
      %v1186 = vld [vmem:[%s3 + $0x98] sm:$0xf]
      %v1187 = vld [vmem:[%s3 + $0x9c] sm:$0xf]
      %v1188 = vld [vmem:[%s3 + $0xa0] sm:$0xf]
      %v1189 = vld [vmem:[%s3 + $0xa4] sm:$0xf]
      %v1190 = vld [vmem:[%s3 + $0xa8] sm:$0xf]
      %v1191 = vld [vmem:[%s3 + $0xac] sm:$0xf]
      %v1192 = vld [vmem:[%s3 + $0xb0] sm:$0xf]
      %v1193 = vld [vmem:[%s3 + $0xb4] sm:$0xf]
      %v1194 = vld [vmem:[%s3 + $0xb8] sm:$0xf]
      %v1195 = vld [vmem:[%s3 + $0xbc] sm:$0xf]
      %s1196 = scalar_lea.vmem %s3, 192
      %v1197 = vld [vmem:[%s1196] sm:$0xf]
      %v1198 = vld [vmem:[%s1196 + $0x4] sm:$0xf]
      %v1199 = vld [vmem:[%s1196 + $0x8] sm:$0xf]
      %v1200 = vld [vmem:[%s1196 + $0xc] sm:$0xf]
      %v1201 = vld [vmem:[%s1196 + $0x10] sm:$0xf]
      %v1202 = vld [vmem:[%s1196 + $0x14] sm:$0xf]
      %v1203 = vld [vmem:[%s1196 + $0x18] sm:$0xf]
      %v1204 = vld [vmem:[%s1196 + $0x1c] sm:$0xf]
      %v1205 = vld [vmem:[%s1196 + $0x20] sm:$0xf]
      %v1206 = vld [vmem:[%s1196 + $0x24] sm:$0xf]
      %v1207 = vld [vmem:[%s1196 + $0x28] sm:$0xf]
      %v1208 = vld [vmem:[%s1196 + $0x2c] sm:$0xf]
      %v1209 = vld [vmem:[%s1196 + $0x30] sm:$0xf]
      %v1210 = vld [vmem:[%s1196 + $0x34] sm:$0xf]
      %v1211 = vld [vmem:[%s1196 + $0x38] sm:$0xf]
      %v1212 = vld [vmem:[%s1196 + $0x3c] sm:$0xf]
      %v1213 = vld [vmem:[%s1196 + $0x40] sm:$0xf]
      %v1214 = vld [vmem:[%s1196 + $0x44] sm:$0xf]
      %v1215 = vld [vmem:[%s1196 + $0x48] sm:$0xf]
      %v1216 = vld [vmem:[%s1196 + $0x4c] sm:$0xf]
      %v1217 = vld [vmem:[%s1196 + $0x50] sm:$0xf]
      %v1218 = vld [vmem:[%s1196 + $0x54] sm:$0xf]
      %v1219 = vld [vmem:[%s1196 + $0x58] sm:$0xf]
      %v1220 = vld [vmem:[%s1196 + $0x5c] sm:$0xf]
      %v1221 = vld [vmem:[%s1196 + $0x60] sm:$0xf]
      %v1222 = vld [vmem:[%s1196 + $0x64] sm:$0xf]
      %v1223 = vld [vmem:[%s1196 + $0x68] sm:$0xf]
      %v1224 = vld [vmem:[%s1196 + $0x6c] sm:$0xf]
      %v1225 = vld [vmem:[%s1196 + $0x70] sm:$0xf]
      %v1226 = vld [vmem:[%s1196 + $0x74] sm:$0xf]
      %v1227 = vld [vmem:[%s1196 + $0x78] sm:$0xf]
      %v1228 = vld [vmem:[%s1196 + $0x7c] sm:$0xf]
      %v1229 = vld [vmem:[%s1196 + $0x80] sm:$0xf]
      %v1230 = vld [vmem:[%s1196 + $0x84] sm:$0xf]
      %v1231 = vld [vmem:[%s1196 + $0x88] sm:$0xf]
      %v1232 = vld [vmem:[%s1196 + $0x8c] sm:$0xf]
      %v1233 = vld [vmem:[%s1196 + $0x90] sm:$0xf]
      %v1234 = vld [vmem:[%s1196 + $0x94] sm:$0xf]
      %v1235 = vld [vmem:[%s1196 + $0x98] sm:$0xf]
      %v1236 = vld [vmem:[%s1196 + $0x9c] sm:$0xf]
      %v1237 = vld [vmem:[%s1196 + $0xa0] sm:$0xf]
      %v1238 = vld [vmem:[%s1196 + $0xa4] sm:$0xf]
      %v1239 = vld [vmem:[%s1196 + $0xa8] sm:$0xf]
      %v1240 = vld [vmem:[%s1196 + $0xac] sm:$0xf]
      %v1241 = vld [vmem:[%s1196 + $0xb0] sm:$0xf]
      %v1242 = vld [vmem:[%s1196 + $0xb4] sm:$0xf]
      %v1243 = vld [vmem:[%s1196 + $0xb8] sm:$0xf]
      %v1244 = vld [vmem:[%s1196 + $0xbc] sm:$0xf]
      %vm1245 = vsmask.f32 4352
      %v1247 = vshrl.u32 %v979, 16
      %v1249 = vrot.slane %v1247, 3
      %v1250 = vshll.u32 %v979, 16
      %v1252 = vrot.slane %v1250, 4
      %v1253 = vor.u32 %v1249, %v1252
      %v1255 = vshrl.u32 %v980, 16
      %v1257 = vrot.slane %v1255, 3
      %v1258 = vshll.u32 %v980, 16
      %v1260 = vrot.slane %v1258, 4
      %v1261 = vor.u32 %v1257, %v1260
      %v1262 = vsel %vm1245, %v1253, %v1261
      %v1264 = vshrl.u32 %v1022, 16
      %v1266 = vrot.slane %v1264, 3
      %v1267 = vshll.u32 %v1022, 16
      %v1269 = vrot.slane %v1267, 4
      %v1270 = vor.u32 %v1266, %v1269
      %v1271 = vsel %vm1245, %v1270, %v1270
      %v1273 = vshrl.u32 %v1121, 16
      %v1275 = vrot.slane %v1273, 3
      %v1276 = vshll.u32 %v1121, 16
      %v1278 = vrot.slane %v1276, 4
      %v1279 = vor.u32 %v1275, %v1278
      %v1281 = vshrl.u32 %v1123, 16
      %v1283 = vrot.slane %v1281, 3
      %v1284 = vshll.u32 %v1123, 16
      %v1286 = vrot.slane %v1284, 4
      %v1287 = vor.u32 %v1283, %v1286
      %v1288 = vsel %vm1245, %v1279, %v1287
      %v1290 = vshrl.u32 %v981, 16
      %v1292 = vrot.slane %v1290, 3
      %v1293 = vshll.u32 %v981, 16
      %v1295 = vrot.slane %v1293, 4
      %v1296 = vor.u32 %v1292, %v1295
      %v1298 = vshrl.u32 %v982, 16
      %v1300 = vrot.slane %v1298, 3
      %v1301 = vshll.u32 %v982, 16
      %v1303 = vrot.slane %v1301, 4
      %v1304 = vor.u32 %v1300, %v1303
      %v1305 = vsel %vm1245, %v1296, %v1304
      %v1307 = vshrl.u32 %v1030, 16
      %v1309 = vrot.slane %v1307, 3
      %v1310 = vshll.u32 %v1030, 16
      %v1312 = vrot.slane %v1310, 4
      %v1313 = vor.u32 %v1309, %v1312
      %v1314 = vsel %vm1245, %v1313, %v1313
      %v1316 = vshrl.u32 %v1124, 16
      %v1318 = vrot.slane %v1316, 3
      %v1319 = vshll.u32 %v1124, 16
      %v1321 = vrot.slane %v1319, 4
      %v1322 = vor.u32 %v1318, %v1321
      %v1324 = vshrl.u32 %v1126, 16
      %v1326 = vrot.slane %v1324, 3
      %v1327 = vshll.u32 %v1126, 16
      %v1329 = vrot.slane %v1327, 4
      %v1330 = vor.u32 %v1326, %v1329
      %v1331 = vsel %vm1245, %v1322, %v1330
      %v1333 = vshrl.u32 %v983, 16
      %v1335 = vrot.slane %v1333, 3
      %v1336 = vshll.u32 %v983, 16
      %v1338 = vrot.slane %v1336, 4
      %v1339 = vor.u32 %v1335, %v1338
      %v1341 = vshrl.u32 %v984, 16
      %v1343 = vrot.slane %v1341, 3
      %v1344 = vshll.u32 %v984, 16
      %v1346 = vrot.slane %v1344, 4
      %v1347 = vor.u32 %v1343, %v1346
      %v1348 = vsel %vm1245, %v1339, %v1347
      %v1350 = vshrl.u32 %v1038, 16
      %v1352 = vrot.slane %v1350, 3
      %v1353 = vshll.u32 %v1038, 16
      %v1355 = vrot.slane %v1353, 4
      %v1356 = vor.u32 %v1352, %v1355
      %v1357 = vsel %vm1245, %v1356, %v1356
      %v1359 = vshrl.u32 %v1127, 16
      %v1361 = vrot.slane %v1359, 3
      %v1362 = vshll.u32 %v1127, 16
      %v1364 = vrot.slane %v1362, 4
      %v1365 = vor.u32 %v1361, %v1364
      %v1367 = vshrl.u32 %v1129, 16
      %v1369 = vrot.slane %v1367, 3
      %v1370 = vshll.u32 %v1129, 16
      %v1372 = vrot.slane %v1370, 4
      %v1373 = vor.u32 %v1369, %v1372
      %v1374 = vsel %vm1245, %v1365, %v1373
      %v1376 = vshrl.u32 %v985, 16
      %v1378 = vrot.slane %v1376, 3
      %v1379 = vshll.u32 %v985, 16
      %v1381 = vrot.slane %v1379, 4
      %v1382 = vor.u32 %v1378, %v1381
      %v1384 = vshrl.u32 %v986, 16
      %v1386 = vrot.slane %v1384, 3
      %v1387 = vshll.u32 %v986, 16
      %v1389 = vrot.slane %v1387, 4
      %v1390 = vor.u32 %v1386, %v1389
      %v1391 = vsel %vm1245, %v1382, %v1390
      %v1393 = vshrl.u32 %v1046, 16
      %v1395 = vrot.slane %v1393, 3
      %v1396 = vshll.u32 %v1046, 16
      %v1398 = vrot.slane %v1396, 4
      %v1399 = vor.u32 %v1395, %v1398
      %v1400 = vsel %vm1245, %v1399, %v1399
      %v1402 = vshrl.u32 %v1130, 16
      %v1404 = vrot.slane %v1402, 3
      %v1405 = vshll.u32 %v1130, 16
      %v1407 = vrot.slane %v1405, 4
      %v1408 = vor.u32 %v1404, %v1407
      %v1410 = vshrl.u32 %v1132, 16
      %v1412 = vrot.slane %v1410, 3
      %v1413 = vshll.u32 %v1132, 16
      %v1415 = vrot.slane %v1413, 4
      %v1416 = vor.u32 %v1412, %v1415
      %v1417 = vsel %vm1245, %v1408, %v1416
      %v1419 = vshrl.u32 %v987, 16
      %v1421 = vrot.slane %v1419, 3
      %v1422 = vshll.u32 %v987, 16
      %v1424 = vrot.slane %v1422, 4
      %v1425 = vor.u32 %v1421, %v1424
      %v1427 = vshrl.u32 %v988, 16
      %v1429 = vrot.slane %v1427, 3
      %v1430 = vshll.u32 %v988, 16
      %v1432 = vrot.slane %v1430, 4
      %v1433 = vor.u32 %v1429, %v1432
      %v1434 = vsel %vm1245, %v1425, %v1433
      %v1436 = vshrl.u32 %v1054, 16
      %v1438 = vrot.slane %v1436, 3
      %v1439 = vshll.u32 %v1054, 16
      %v1441 = vrot.slane %v1439, 4
      %v1442 = vor.u32 %v1438, %v1441
      %v1443 = vsel %vm1245, %v1442, %v1442
      %v1445 = vshrl.u32 %v1133, 16
      %v1447 = vrot.slane %v1445, 3
      %v1448 = vshll.u32 %v1133, 16
      %v1450 = vrot.slane %v1448, 4
      %v1451 = vor.u32 %v1447, %v1450
      %v1453 = vshrl.u32 %v1135, 16
      %v1455 = vrot.slane %v1453, 3
      %v1456 = vshll.u32 %v1135, 16
      %v1458 = vrot.slane %v1456, 4
      %v1459 = vor.u32 %v1455, %v1458
      %v1460 = vsel %vm1245, %v1451, %v1459
      %v1462 = vshrl.u32 %v989, 16
      %v1464 = vrot.slane %v1462, 3
      %v1465 = vshll.u32 %v989, 16
      %v1467 = vrot.slane %v1465, 4
      %v1468 = vor.u32 %v1464, %v1467
      %v1470 = vshrl.u32 %v990, 16
      %v1472 = vrot.slane %v1470, 3
      %v1473 = vshll.u32 %v990, 16
      %v1475 = vrot.slane %v1473, 4
      %v1476 = vor.u32 %v1472, %v1475
      %v1477 = vsel %vm1245, %v1468, %v1476
      %v1479 = vshrl.u32 %v1062, 16
      %v1481 = vrot.slane %v1479, 3
      %v1482 = vshll.u32 %v1062, 16
      %v1484 = vrot.slane %v1482, 4
      %v1485 = vor.u32 %v1481, %v1484
      %v1486 = vsel %vm1245, %v1485, %v1485
      %v1488 = vshrl.u32 %v1136, 16
      %v1490 = vrot.slane %v1488, 3
      %v1491 = vshll.u32 %v1136, 16
      %v1493 = vrot.slane %v1491, 4
      %v1494 = vor.u32 %v1490, %v1493
      %v1496 = vshrl.u32 %v1138, 16
      %v1498 = vrot.slane %v1496, 3
      %v1499 = vshll.u32 %v1138, 16
      %v1501 = vrot.slane %v1499, 4
      %v1502 = vor.u32 %v1498, %v1501
      %v1503 = vsel %vm1245, %v1494, %v1502
      %v1505 = vshrl.u32 %v991, 16
      %v1507 = vrot.slane %v1505, 3
      %v1508 = vshll.u32 %v991, 16
      %v1510 = vrot.slane %v1508, 4
      %v1511 = vor.u32 %v1507, %v1510
      %v1513 = vshrl.u32 %v992, 16
      %v1515 = vrot.slane %v1513, 3
      %v1516 = vshll.u32 %v992, 16
      %v1518 = vrot.slane %v1516, 4
      %v1519 = vor.u32 %v1515, %v1518
      %v1520 = vsel %vm1245, %v1511, %v1519
      %v1522 = vshrl.u32 %v1070, 16
      %v1524 = vrot.slane %v1522, 3
      %v1525 = vshll.u32 %v1070, 16
      %v1527 = vrot.slane %v1525, 4
      %v1528 = vor.u32 %v1524, %v1527
      %v1529 = vsel %vm1245, %v1528, %v1528
      %v1531 = vshrl.u32 %v1139, 16
      %v1533 = vrot.slane %v1531, 3
      %v1534 = vshll.u32 %v1139, 16
      %v1536 = vrot.slane %v1534, 4
      %v1537 = vor.u32 %v1533, %v1536
      %v1539 = vshrl.u32 %v1141, 16
      %v1541 = vrot.slane %v1539, 3
      %v1542 = vshll.u32 %v1141, 16
      %v1544 = vrot.slane %v1542, 4
      %v1545 = vor.u32 %v1541, %v1544
      %v1546 = vsel %vm1245, %v1537, %v1545
      %v1548 = vshrl.u32 %v993, 16
      %v1550 = vrot.slane %v1548, 3
      %v1551 = vshll.u32 %v993, 16
      %v1553 = vrot.slane %v1551, 4
      %v1554 = vor.u32 %v1550, %v1553
      %v1556 = vshrl.u32 %v994, 16
      %v1558 = vrot.slane %v1556, 3
      %v1559 = vshll.u32 %v994, 16
      %v1561 = vrot.slane %v1559, 4
      %v1562 = vor.u32 %v1558, %v1561
      %v1563 = vsel %vm1245, %v1554, %v1562
      %v1565 = vshrl.u32 %v1078, 16
      %v1567 = vrot.slane %v1565, 3
      %v1568 = vshll.u32 %v1078, 16
      %v1570 = vrot.slane %v1568, 4
      %v1571 = vor.u32 %v1567, %v1570
      %v1572 = vsel %vm1245, %v1571, %v1571
      %v1574 = vshrl.u32 %v1142, 16
      %v1576 = vrot.slane %v1574, 3
      %v1577 = vshll.u32 %v1142, 16
      %v1579 = vrot.slane %v1577, 4
      %v1580 = vor.u32 %v1576, %v1579
      %v1582 = vshrl.u32 %v1144, 16
      %v1584 = vrot.slane %v1582, 3
      %v1585 = vshll.u32 %v1144, 16
      %v1587 = vrot.slane %v1585, 4
      %v1588 = vor.u32 %v1584, %v1587
      %v1589 = vsel %vm1245, %v1580, %v1588
      %v1662 = vunpack.c.l.b16 %v1197
      %v1663 = vunpack.c.l.b16 %v1198
      %v1664 = vunpack.c.l.b16 %v1199
      %v1665 = vunpack.c.l.b16 %v1200
      %v1666 = vunpack.c.l.b16 %v1201
      %v1667 = vunpack.c.l.b16 %v1202
      %v1668 = vunpack.c.l.b16 %v1203
      %v1669 = vunpack.c.l.b16 %v1204
      %v1670 = vunpack.c.l.b16 %v1205
      %v1671 = vunpack.c.l.b16 %v1206
      %v1672 = vunpack.c.l.b16 %v1207
      %v1673 = vunpack.c.l.b16 %v1208
      %v1674 = vunpack.c.l.b16 %v1209
      %v1675 = vunpack.c.l.b16 %v1210
      %v1676 = vunpack.c.l.b16 %v1211
      %v1677 = vunpack.c.l.b16 %v1212
      %v1678 = vunpack.c.l.b16 %v1213
      %v1679 = vunpack.c.l.b16 %v1214
      %v1680 = vunpack.c.l.b16 %v1215
      %v1681 = vunpack.c.l.b16 %v1216
      %v1682 = vunpack.c.l.b16 %v1217
      %v1683 = vunpack.c.l.b16 %v1218
      %v1684 = vunpack.c.l.b16 %v1219
      %v1685 = vunpack.c.l.b16 %v1220
      %v1686 = vunpack.c.l.b16 %v1221
      %v1687 = vunpack.c.l.b16 %v1222
      %v1688 = vunpack.c.l.b16 %v1223
      %v1689 = vunpack.c.l.b16 %v1224
      %v1690 = vunpack.c.l.b16 %v1225
      %v1691 = vunpack.c.l.b16 %v1226
      %v1692 = vunpack.c.l.b16 %v1227
      %v1693 = vunpack.c.l.b16 %v1228
      %v1694 = vunpack.c.l.b16 %v1229
      %v1695 = vunpack.c.l.b16 %v1230
      %v1696 = vunpack.c.l.b16 %v1231
      %v1697 = vunpack.c.l.b16 %v1232
      %v1698 = vunpack.c.l.b16 %v1233
      %v1699 = vunpack.c.l.b16 %v1234
      %v1700 = vunpack.c.l.b16 %v1235
      %v1701 = vunpack.c.l.b16 %v1236
      %v1702 = vunpack.c.l.b16 %v1237
      %v1703 = vunpack.c.l.b16 %v1238
      %v1704 = vunpack.c.l.b16 %v1239
      %v1705 = vunpack.c.l.b16 %v1240
      %v1706 = vunpack.c.l.b16 %v1241
      %v1707 = vunpack.c.l.b16 %v1242
      %v1708 = vunpack.c.l.b16 %v1243
      %v1709 = vunpack.c.l.b16 %v1244
      %v1710 = vpack.c.b16 %v1663, %v1662
      %v1711 = vpack.c.b16 %v1665, %v1664
      %v1712 = vpack.c.b16 %v1667, %v1666
      %v1713 = vpack.c.b16 %v1669, %v1668
      %v1714 = vpack.c.b16 %v1671, %v1670
      %v1715 = vpack.c.b16 %v1673, %v1672
      %v1716 = vpack.c.b16 %v1675, %v1674
      %v1717 = vpack.c.b16 %v1677, %v1676
      %v1718 = vpack.c.b16 %v1679, %v1678
      %v1719 = vpack.c.b16 %v1681, %v1680
      %v1720 = vpack.c.b16 %v1683, %v1682
      %v1721 = vpack.c.b16 %v1685, %v1684
      %v1722 = vpack.c.b16 %v1687, %v1686
      %v1723 = vpack.c.b16 %v1689, %v1688
      %v1724 = vpack.c.b16 %v1691, %v1690
      %v1725 = vpack.c.b16 %v1693, %v1692
      %v1726 = vpack.c.b16 %v1695, %v1694
      %v1727 = vpack.c.b16 %v1697, %v1696
      %v1728 = vpack.c.b16 %v1699, %v1698
      %v1729 = vpack.c.b16 %v1701, %v1700
      %v1730 = vpack.c.b16 %v1703, %v1702
      %v1731 = vpack.c.b16 %v1705, %v1704
      %v1732 = vpack.c.b16 %v1707, %v1706
      %v1733 = vpack.c.b16 %v1709, %v1708
      %1758 = vmatpush.bf16.msra.mxu0 %v1717
      %1759 = vmatpush.bf16.msra.mxu0 %v1716
      %1760 = vmatpush.bf16.msra.mxu0 %v1715
      %1761 = vmatpush.bf16.msra.mxu0 %v1714
      %1762 = vmatpush.bf16.msra.mxu0 %v1713
      %1763 = vmatpush.bf16.msra.mxu0 %v1712
      %1764 = vmatpush.bf16.msra.mxu0 %v1711
      %1765 = vmatpush.bf16.msra.mxu0 %v1710
      %1766 = vmatmul.bf16.gmra.mxu0 %v1262
      %v1767 = vpop.f32.mrf.mxu0
      %v1768 = vadd.f32 0.0, %v1767
      %v1769 = vpop.f32.mrf.mxu0
      %v1770 = vadd.f32 0.0, %v1769
      %1771 = vmatmul.bf16.gmra.mxu0 %v1305
      %v1772 = vpop.f32.mrf.mxu0
      %v1773 = vadd.f32 0.0, %v1772
      %v1774 = vpop.f32.mrf.mxu0
      %v1775 = vadd.f32 0.0, %v1774
      %1776 = vmatmul.bf16.gmra.mxu0 %v1348
      %v1777 = vpop.f32.mrf.mxu0
      %v1778 = vadd.f32 0.0, %v1777
      %v1779 = vpop.f32.mrf.mxu0
      %v1780 = vadd.f32 0.0, %v1779
      %1781 = vmatmul.bf16.gmra.mxu0 %v1391
      %v1782 = vpop.f32.mrf.mxu0
      %v1783 = vadd.f32 0.0, %v1782
      %v1784 = vpop.f32.mrf.mxu0
      %v1785 = vadd.f32 0.0, %v1784
      %1786 = vmatmul.bf16.gmra.mxu0 %v1434
      %v1787 = vpop.f32.mrf.mxu0
      %v1788 = vadd.f32 0.0, %v1787
      %v1789 = vpop.f32.mrf.mxu0
      %v1790 = vadd.f32 0.0, %v1789
      %1791 = vmatmul.bf16.gmra.mxu0 %v1477
      %v1792 = vpop.f32.mrf.mxu0
      %v1793 = vadd.f32 0.0, %v1792
      %v1794 = vpop.f32.mrf.mxu0
      %v1795 = vadd.f32 0.0, %v1794
      %1796 = vmatmul.bf16.gmra.mxu0 %v1520
      %v1797 = vpop.f32.mrf.mxu0
      %v1798 = vadd.f32 0.0, %v1797
      %v1799 = vpop.f32.mrf.mxu0
      %v1800 = vadd.f32 0.0, %v1799
      %1801 = vmatmul.bf16.gmra.mxu0 %v1563
      %v1802 = vpop.f32.mrf.mxu0
      %v1803 = vadd.f32 0.0, %v1802
      %v1804 = vpop.f32.mrf.mxu0
      %v1805 = vadd.f32 0.0, %v1804
      %1806 = vdwg.mxu0
      %1807 = vmatpush.bf16.msra.mxu0 %v1725
      %1808 = vmatpush.bf16.msra.mxu0 %v1724
      %1809 = vmatpush.bf16.msra.mxu0 %v1723
      %1810 = vmatpush.bf16.msra.mxu0 %v1722
      %1811 = vmatpush.bf16.msra.mxu0 %v1721
      %1812 = vmatpush.bf16.msra.mxu0 %v1720
      %1813 = vmatpush.bf16.msra.mxu0 %v1719
      %1814 = vmatpush.bf16.msra.mxu0 %v1718
      %1815 = vmatmul.bf16.gmra.mxu0 %v1271
      %v1816 = vpop.f32.mrf.mxu0
      %v1817 = vadd.f32 %v1768, %v1816
      %v1818 = vpop.f32.mrf.mxu0
      %v1819 = vadd.f32 %v1770, %v1818
      %1820 = vmatmul.bf16.gmra.mxu0 %v1314
      %v1821 = vpop.f32.mrf.mxu0
      %v1822 = vadd.f32 %v1773, %v1821
      %v1823 = vpop.f32.mrf.mxu0
      %v1824 = vadd.f32 %v1775, %v1823
      %1825 = vmatmul.bf16.gmra.mxu0 %v1357
      %v1826 = vpop.f32.mrf.mxu0
      %v1827 = vadd.f32 %v1778, %v1826
      %v1828 = vpop.f32.mrf.mxu0
      %v1829 = vadd.f32 %v1780, %v1828
      %1830 = vmatmul.bf16.gmra.mxu0 %v1400
      %v1831 = vpop.f32.mrf.mxu0
      %v1832 = vadd.f32 %v1783, %v1831
      %v1833 = vpop.f32.mrf.mxu0
      %v1834 = vadd.f32 %v1785, %v1833
      %1835 = vmatmul.bf16.gmra.mxu0 %v1443
      %v1836 = vpop.f32.mrf.mxu0
      %v1837 = vadd.f32 %v1788, %v1836
      %v1838 = vpop.f32.mrf.mxu0
      %v1839 = vadd.f32 %v1790, %v1838
      %1840 = vmatmul.bf16.gmra.mxu0 %v1486
      %v1841 = vpop.f32.mrf.mxu0
      %v1842 = vadd.f32 %v1793, %v1841
      %v1843 = vpop.f32.mrf.mxu0
      %v1844 = vadd.f32 %v1795, %v1843
      %1845 = vmatmul.bf16.gmra.mxu0 %v1529
      %v1846 = vpop.f32.mrf.mxu0
      %v1847 = vadd.f32 %v1798, %v1846
      %v1848 = vpop.f32.mrf.mxu0
      %v1849 = vadd.f32 %v1800, %v1848
      %1850 = vmatmul.bf16.gmra.mxu0 %v1572
      %v1851 = vpop.f32.mrf.mxu0
      %v1852 = vadd.f32 %v1803, %v1851
      %v1853 = vpop.f32.mrf.mxu0
      %v1854 = vadd.f32 %v1805, %v1853
      %1855 = vdwg.mxu0
      %1856 = vmatpush.bf16.msra.mxu0 %v1733
      %1857 = vmatpush.bf16.msra.mxu0 %v1732
      %1858 = vmatpush.bf16.msra.mxu0 %v1731
      %1859 = vmatpush.bf16.msra.mxu0 %v1730
      %1860 = vmatpush.bf16.msra.mxu0 %v1729
      %1861 = vmatpush.bf16.msra.mxu0 %v1728
      %1862 = vmatpush.bf16.msra.mxu0 %v1727
      %1863 = vmatpush.bf16.msra.mxu0 %v1726
      %1864 = vmatmul.bf16.gmra.mxu0 %v1288
      %v1865 = vpop.f32.mrf.mxu0
      %v1866 = vadd.f32 %v1817, %v1865
      %v1867 = vpop.f32.mrf.mxu0
      %v1868 = vadd.f32 %v1819, %v1867
      %1869 = vmatmul.bf16.gmra.mxu0 %v1331
      %v1870 = vpop.f32.mrf.mxu0
      %v1871 = vadd.f32 %v1822, %v1870
      %v1872 = vpop.f32.mrf.mxu0
      %v1873 = vadd.f32 %v1824, %v1872
      %1874 = vmatmul.bf16.gmra.mxu0 %v1374
      %v1875 = vpop.f32.mrf.mxu0
      %v1876 = vadd.f32 %v1827, %v1875
      %v1877 = vpop.f32.mrf.mxu0
      %v1878 = vadd.f32 %v1829, %v1877
      %1879 = vmatmul.bf16.gmra.mxu0 %v1417
      %v1880 = vpop.f32.mrf.mxu0
      %v1881 = vadd.f32 %v1832, %v1880
      %v1882 = vpop.f32.mrf.mxu0
      %v1883 = vadd.f32 %v1834, %v1882
      %1884 = vmatmul.bf16.gmra.mxu0 %v1460
      %v1885 = vpop.f32.mrf.mxu0
      %v1886 = vadd.f32 %v1837, %v1885
      %v1887 = vpop.f32.mrf.mxu0
      %v1888 = vadd.f32 %v1839, %v1887
      %1889 = vmatmul.bf16.gmra.mxu0 %v1503
      %v1890 = vpop.f32.mrf.mxu0
      %v1891 = vadd.f32 %v1842, %v1890
      %v1892 = vpop.f32.mrf.mxu0
      %v1893 = vadd.f32 %v1844, %v1892
      %1894 = vmatmul.bf16.gmra.mxu0 %v1546
      %v1895 = vpop.f32.mrf.mxu0
      %v1896 = vadd.f32 %v1847, %v1895
      %v1897 = vpop.f32.mrf.mxu0
      %v1898 = vadd.f32 %v1849, %v1897
      %1899 = vmatmul.bf16.gmra.mxu0 %v1589
      %v1900 = vpop.f32.mrf.mxu0
      %v1901 = vadd.f32 %v1852, %v1900
      %v1902 = vpop.f32.mrf.mxu0
      %v1903 = vadd.f32 %v1854, %v1902
      %1904 = vdwg.mxu0
      %v1906 = vshrl.u32 %v977, 16
      %v1908 = vrot.slane %v1906, 3
      %v1909 = vshll.u32 %v977, 16
      %v1911 = vrot.slane %v1909, 4
      %v1912 = vor.u32 %v1908, %v1911
      %v1914 = vshrl.u32 %v978, 16
      %v1916 = vrot.slane %v1914, 3
      %v1917 = vshll.u32 %v978, 16
      %v1919 = vrot.slane %v1917, 4
      %v1920 = vor.u32 %v1916, %v1919
      %v1921 = vsel %vm1245, %v1912, %v1920
      %v1923 = vshrl.u32 %v1014, 16
      %v1925 = vrot.slane %v1923, 3
      %v1926 = vshll.u32 %v1014, 16
      %v1928 = vrot.slane %v1926, 4
      %v1929 = vor.u32 %v1925, %v1928
      %v1930 = vsel %vm1245, %v1929, %v1929
      %v1932 = vshrl.u32 %v1118, 16
      %v1934 = vrot.slane %v1932, 3
      %v1935 = vshll.u32 %v1118, 16
      %v1937 = vrot.slane %v1935, 4
      %v1938 = vor.u32 %v1934, %v1937
      %v1940 = vshrl.u32 %v1120, 16
      %v1942 = vrot.slane %v1940, 3
      %v1943 = vshll.u32 %v1120, 16
      %v1945 = vrot.slane %v1943, 4
      %v1946 = vor.u32 %v1942, %v1945
      %v1947 = vsel %vm1245, %v1938, %v1946
      %v1999 = vunpack.c.l.b16 %v1148
      %v2000 = vunpack.c.l.b16 %v1149
      %v2001 = vunpack.c.l.b16 %v1150
      %v2002 = vunpack.c.l.b16 %v1151
      %v2003 = vunpack.c.l.b16 %v1152
      %v2004 = vunpack.c.l.b16 %v1153
      %v2005 = vunpack.c.l.b16 %v1154
      %v2006 = vunpack.c.l.b16 %v1155
      %v2007 = vunpack.c.l.b16 %v1156
      %v2008 = vunpack.c.l.b16 %v1157
      %v2009 = vunpack.c.l.b16 %v1158
      %v2010 = vunpack.c.l.b16 %v1159
      %v2011 = vunpack.c.l.b16 %v1160
      %v2012 = vunpack.c.l.b16 %v1161
      %v2013 = vunpack.c.l.b16 %v1162
      %v2014 = vunpack.c.l.b16 %v1163
      %v2015 = vunpack.c.l.b16 %v1164
      %v2016 = vunpack.c.l.b16 %v1165
      %v2017 = vunpack.c.l.b16 %v1166
      %v2018 = vunpack.c.l.b16 %v1167
      %v2019 = vunpack.c.l.b16 %v1168
      %v2020 = vunpack.c.l.b16 %v1169
      %v2021 = vunpack.c.l.b16 %v1170
      %v2022 = vunpack.c.l.b16 %v1171
      %v2023 = vunpack.c.l.b16 %v1172
      %v2024 = vunpack.c.l.b16 %v1173
      %v2025 = vunpack.c.l.b16 %v1174
      %v2026 = vunpack.c.l.b16 %v1175
      %v2027 = vunpack.c.l.b16 %v1176
      %v2028 = vunpack.c.l.b16 %v1177
      %v2029 = vunpack.c.l.b16 %v1178
      %v2030 = vunpack.c.l.b16 %v1179
      %v2031 = vunpack.c.l.b16 %v1180
      %v2032 = vunpack.c.l.b16 %v1181
      %v2033 = vunpack.c.l.b16 %v1182
      %v2034 = vunpack.c.l.b16 %v1183
      %v2035 = vunpack.c.l.b16 %v1184
      %v2036 = vunpack.c.l.b16 %v1185
      %v2037 = vunpack.c.l.b16 %v1186
      %v2038 = vunpack.c.l.b16 %v1187
      %v2039 = vunpack.c.l.b16 %v1188
      %v2040 = vunpack.c.l.b16 %v1189
      %v2041 = vunpack.c.l.b16 %v1190
      %v2042 = vunpack.c.l.b16 %v1191
      %v2043 = vunpack.c.l.b16 %v1192
      %v2044 = vunpack.c.l.b16 %v1193
      %v2045 = vunpack.c.l.b16 %v1194
      %v2046 = vunpack.c.l.b16 %v1195
      %v2047 = vpack.c.b16 %v2000, %v1999
      %v2048 = vpack.c.b16 %v2002, %v2001
      %v2049 = vpack.c.b16 %v2004, %v2003
      %v2050 = vpack.c.b16 %v2006, %v2005
      %v2051 = vpack.c.b16 %v2008, %v2007
      %v2052 = vpack.c.b16 %v2010, %v2009
      %v2053 = vpack.c.b16 %v2012, %v2011
      %v2054 = vpack.c.b16 %v2014, %v2013
      %v2055 = vpack.c.b16 %v2016, %v2015
      %v2056 = vpack.c.b16 %v2018, %v2017
      %v2057 = vpack.c.b16 %v2020, %v2019
      %v2058 = vpack.c.b16 %v2022, %v2021
      %v2059 = vpack.c.b16 %v2024, %v2023
      %v2060 = vpack.c.b16 %v2026, %v2025
      %v2061 = vpack.c.b16 %v2028, %v2027
      %v2062 = vpack.c.b16 %v2030, %v2029
      %v2063 = vpack.c.b16 %v2032, %v2031
      %v2064 = vpack.c.b16 %v2034, %v2033
      %v2065 = vpack.c.b16 %v2036, %v2035
      %v2066 = vpack.c.b16 %v2038, %v2037
      %v2067 = vpack.c.b16 %v2040, %v2039
      %v2068 = vpack.c.b16 %v2042, %v2041
      %v2069 = vpack.c.b16 %v2044, %v2043
      %v2070 = vpack.c.b16 %v2046, %v2045
      %2095 = vmatpush.bf16.msra.mxu0 %v2054
      %2096 = vmatpush.bf16.msra.mxu0 %v2053
      %2097 = vmatpush.bf16.msra.mxu0 %v2052
      %2098 = vmatpush.bf16.msra.mxu0 %v2051
      %2099 = vmatpush.bf16.msra.mxu0 %v2050
      %2100 = vmatpush.bf16.msra.mxu0 %v2049
      %2101 = vmatpush.bf16.msra.mxu0 %v2048
      %2102 = vmatpush.bf16.msra.mxu0 %v2047
      %2103 = vmatmul.bf16.gmra.mxu0 %v1921
      %v2104 = vpop.f32.mrf.mxu0
      %v2105 = vadd.f32 %v1866, %v2104
      %v2106 = vpop.f32.mrf.mxu0
      %v2107 = vadd.f32 %v1868, %v2106
      %2108 = vmatmul.bf16.gmra.mxu0 %v1262
      %v2109 = vpop.f32.mrf.mxu0
      %v2110 = vadd.f32 %v1871, %v2109
      %v2111 = vpop.f32.mrf.mxu0
      %v2112 = vadd.f32 %v1873, %v2111
      %2113 = vmatmul.bf16.gmra.mxu0 %v1305
      %v2114 = vpop.f32.mrf.mxu0
      %v2115 = vadd.f32 %v1876, %v2114
      %v2116 = vpop.f32.mrf.mxu0
      %v2117 = vadd.f32 %v1878, %v2116
      %2118 = vmatmul.bf16.gmra.mxu0 %v1348
      %v2119 = vpop.f32.mrf.mxu0
      %v2120 = vadd.f32 %v1881, %v2119
      %v2121 = vpop.f32.mrf.mxu0
      %v2122 = vadd.f32 %v1883, %v2121
      %2123 = vmatmul.bf16.gmra.mxu0 %v1391
      %v2124 = vpop.f32.mrf.mxu0
      %v2125 = vadd.f32 %v1886, %v2124
      %v2126 = vpop.f32.mrf.mxu0
      %v2127 = vadd.f32 %v1888, %v2126
      %2128 = vmatmul.bf16.gmra.mxu0 %v1434
      %v2129 = vpop.f32.mrf.mxu0
      %v2130 = vadd.f32 %v1891, %v2129
      %v2131 = vpop.f32.mrf.mxu0
      %v2132 = vadd.f32 %v1893, %v2131
      %2133 = vmatmul.bf16.gmra.mxu0 %v1477
      %v2134 = vpop.f32.mrf.mxu0
      %v2135 = vadd.f32 %v1896, %v2134
      %v2136 = vpop.f32.mrf.mxu0
      %v2137 = vadd.f32 %v1898, %v2136
      %2138 = vmatmul.bf16.gmra.mxu0 %v1520
      %v2139 = vpop.f32.mrf.mxu0
      %v2140 = vadd.f32 %v1901, %v2139
      %v2141 = vpop.f32.mrf.mxu0
      %v2142 = vadd.f32 %v1903, %v2141
      %2143 = vdwg.mxu0
      %2144 = vmatpush.bf16.msra.mxu0 %v2062
      %2145 = vmatpush.bf16.msra.mxu0 %v2061
      %2146 = vmatpush.bf16.msra.mxu0 %v2060
      %2147 = vmatpush.bf16.msra.mxu0 %v2059
      %2148 = vmatpush.bf16.msra.mxu0 %v2058
      %2149 = vmatpush.bf16.msra.mxu0 %v2057
      %2150 = vmatpush.bf16.msra.mxu0 %v2056
      %2151 = vmatpush.bf16.msra.mxu0 %v2055
      %2152 = vmatmul.bf16.gmra.mxu0 %v1930
      %v2153 = vpop.f32.mrf.mxu0
      %v2154 = vadd.f32 %v2105, %v2153
      %v2155 = vpop.f32.mrf.mxu0
      %v2156 = vadd.f32 %v2107, %v2155
      %2157 = vmatmul.bf16.gmra.mxu0 %v1271
      %v2158 = vpop.f32.mrf.mxu0
      %v2159 = vadd.f32 %v2110, %v2158
      %v2160 = vpop.f32.mrf.mxu0
      %v2161 = vadd.f32 %v2112, %v2160
      %2162 = vmatmul.bf16.gmra.mxu0 %v1314
      %v2163 = vpop.f32.mrf.mxu0
      %v2164 = vadd.f32 %v2115, %v2163
      %v2165 = vpop.f32.mrf.mxu0
      %v2166 = vadd.f32 %v2117, %v2165
      %2167 = vmatmul.bf16.gmra.mxu0 %v1357
      %v2168 = vpop.f32.mrf.mxu0
      %v2169 = vadd.f32 %v2120, %v2168
      %v2170 = vpop.f32.mrf.mxu0
      %v2171 = vadd.f32 %v2122, %v2170
      %2172 = vmatmul.bf16.gmra.mxu0 %v1400
      %v2173 = vpop.f32.mrf.mxu0
      %v2174 = vadd.f32 %v2125, %v2173
      %v2175 = vpop.f32.mrf.mxu0
      %v2176 = vadd.f32 %v2127, %v2175
      %2177 = vmatmul.bf16.gmra.mxu0 %v1443
      %v2178 = vpop.f32.mrf.mxu0
      %v2179 = vadd.f32 %v2130, %v2178
      %v2180 = vpop.f32.mrf.mxu0
      %v2181 = vadd.f32 %v2132, %v2180
      %2182 = vmatmul.bf16.gmra.mxu0 %v1486
      %v2183 = vpop.f32.mrf.mxu0
      %v2184 = vadd.f32 %v2135, %v2183
      %v2185 = vpop.f32.mrf.mxu0
      %v2186 = vadd.f32 %v2137, %v2185
      %2187 = vmatmul.bf16.gmra.mxu0 %v1529
      %v2188 = vpop.f32.mrf.mxu0
      %v2189 = vadd.f32 %v2140, %v2188
      %v2190 = vpop.f32.mrf.mxu0
      %v2191 = vadd.f32 %v2142, %v2190
      %2192 = vdwg.mxu0
      %2193 = vmatpush.bf16.msra.mxu0 %v2070
      %2194 = vmatpush.bf16.msra.mxu0 %v2069
      %2195 = vmatpush.bf16.msra.mxu0 %v2068
      %2196 = vmatpush.bf16.msra.mxu0 %v2067
      %2197 = vmatpush.bf16.msra.mxu0 %v2066
      %2198 = vmatpush.bf16.msra.mxu0 %v2065
      %2199 = vmatpush.bf16.msra.mxu0 %v2064
      %2200 = vmatpush.bf16.msra.mxu0 %v2063
      %2201 = vmatmul.bf16.gmra.mxu0 %v1947
      %v2202 = vpop.f32.mrf.mxu0
      %v2203 = vadd.f32 %v2154, %v2202
      %v2204 = vpop.f32.mrf.mxu0
      %v2205 = vadd.f32 %v2156, %v2204
      %2206 = vmatmul.bf16.gmra.mxu0 %v1288
      %v2207 = vpop.f32.mrf.mxu0
      %v2208 = vadd.f32 %v2159, %v2207
      %v2209 = vpop.f32.mrf.mxu0
      %v2210 = vadd.f32 %v2161, %v2209
      %2211 = vmatmul.bf16.gmra.mxu0 %v1331
      %v2212 = vpop.f32.mrf.mxu0
      %v2213 = vadd.f32 %v2164, %v2212
      %v2214 = vpop.f32.mrf.mxu0
      %v2215 = vadd.f32 %v2166, %v2214
      %2216 = vmatmul.bf16.gmra.mxu0 %v1374
      %v2217 = vpop.f32.mrf.mxu0
      %v2218 = vadd.f32 %v2169, %v2217
      %v2219 = vpop.f32.mrf.mxu0
      %v2220 = vadd.f32 %v2171, %v2219
      %2221 = vmatmul.bf16.gmra.mxu0 %v1417
      %v2222 = vpop.f32.mrf.mxu0
      %v2223 = vadd.f32 %v2174, %v2222
      %v2224 = vpop.f32.mrf.mxu0
      %v2225 = vadd.f32 %v2176, %v2224
      %2226 = vmatmul.bf16.gmra.mxu0 %v1460
      %v2227 = vpop.f32.mrf.mxu0
      %v2228 = vadd.f32 %v2179, %v2227
      %v2229 = vpop.f32.mrf.mxu0
      %v2230 = vadd.f32 %v2181, %v2229
      %2231 = vmatmul.bf16.gmra.mxu0 %v1503
      %v2232 = vpop.f32.mrf.mxu0
      %v2233 = vadd.f32 %v2184, %v2232
      %v2234 = vpop.f32.mrf.mxu0
      %v2235 = vadd.f32 %v2186, %v2234
      %2236 = vmatmul.bf16.gmra.mxu0 %v1546
      %v2237 = vpop.f32.mrf.mxu0
      %v2238 = vadd.f32 %v2189, %v2237
      %v2239 = vpop.f32.mrf.mxu0
      %v2240 = vadd.f32 %v2191, %v2239
      %2241 = vdwg.mxu0
      %s2242 = scalar_lea.vmem %s3, 384
      %v2243 = vld [vmem:[%s2242] sm:$0xf]
      %v2244 = vld [vmem:[%s2242 + $0x4] sm:$0xf]
      %v2245 = vld [vmem:[%s2242 + $0x8] sm:$0xf]
      %v2246 = vld [vmem:[%s2242 + $0xc] sm:$0xf]
      %v2247 = vld [vmem:[%s2242 + $0x10] sm:$0xf]
      %v2248 = vld [vmem:[%s2242 + $0x14] sm:$0xf]
      %v2249 = vld [vmem:[%s2242 + $0x18] sm:$0xf]
      %v2250 = vld [vmem:[%s2242 + $0x1c] sm:$0xf]
      %v2251 = vld [vmem:[%s2242 + $0x20] sm:$0xf]
      %v2252 = vld [vmem:[%s2242 + $0x24] sm:$0xf]
      %v2253 = vld [vmem:[%s2242 + $0x28] sm:$0xf]
      %v2254 = vld [vmem:[%s2242 + $0x2c] sm:$0xf]
      %v2255 = vld [vmem:[%s2242 + $0x30] sm:$0xf]
      %v2256 = vld [vmem:[%s2242 + $0x34] sm:$0xf]
      %v2257 = vld [vmem:[%s2242 + $0x38] sm:$0xf]
      %v2258 = vld [vmem:[%s2242 + $0x3c] sm:$0xf]
      %v2259 = vld [vmem:[%s2242 + $0x40] sm:$0xf]
      %v2260 = vld [vmem:[%s2242 + $0x44] sm:$0xf]
      %v2261 = vld [vmem:[%s2242 + $0x48] sm:$0xf]
      %v2262 = vld [vmem:[%s2242 + $0x4c] sm:$0xf]
      %v2263 = vld [vmem:[%s2242 + $0x50] sm:$0xf]
      %v2264 = vld [vmem:[%s2242 + $0x54] sm:$0xf]
      %v2265 = vld [vmem:[%s2242 + $0x58] sm:$0xf]
      %v2266 = vld [vmem:[%s2242 + $0x5c] sm:$0xf]
      %v2267 = vld [vmem:[%s2242 + $0x60] sm:$0xf]
      %v2268 = vld [vmem:[%s2242 + $0x64] sm:$0xf]
      %v2269 = vld [vmem:[%s2242 + $0x68] sm:$0xf]
      %v2270 = vld [vmem:[%s2242 + $0x6c] sm:$0xf]
      %v2271 = vld [vmem:[%s2242 + $0x70] sm:$0xf]
      %v2272 = vld [vmem:[%s2242 + $0x74] sm:$0xf]
      %v2273 = vld [vmem:[%s2242 + $0x78] sm:$0xf]
      %v2274 = vld [vmem:[%s2242 + $0x7c] sm:$0xf]
      %v2275 = vld [vmem:[%s2242 + $0x80] sm:$0xf]
      %v2276 = vld [vmem:[%s2242 + $0x84] sm:$0xf]
      %v2277 = vld [vmem:[%s2242 + $0x88] sm:$0xf]
      %v2278 = vld [vmem:[%s2242 + $0x8c] sm:$0xf]
      %v2279 = vld [vmem:[%s2242 + $0x90] sm:$0xf]
      %v2280 = vld [vmem:[%s2242 + $0x94] sm:$0xf]
      %v2281 = vld [vmem:[%s2242 + $0x98] sm:$0xf]
      %v2282 = vld [vmem:[%s2242 + $0x9c] sm:$0xf]
      %v2283 = vld [vmem:[%s2242 + $0xa0] sm:$0xf]
      %v2284 = vld [vmem:[%s2242 + $0xa4] sm:$0xf]
      %v2285 = vld [vmem:[%s2242 + $0xa8] sm:$0xf]
      %v2286 = vld [vmem:[%s2242 + $0xac] sm:$0xf]
      %v2287 = vld [vmem:[%s2242 + $0xb0] sm:$0xf]
      %v2288 = vld [vmem:[%s2242 + $0xb4] sm:$0xf]
      %v2289 = vld [vmem:[%s2242 + $0xb8] sm:$0xf]
      %v2290 = vld [vmem:[%s2242 + $0xbc] sm:$0xf]
      %v2292 = vshrl.u32 %v995, 16
      %v2294 = vrot.slane %v2292, 3
      %v2295 = vshll.u32 %v995, 16
      %v2297 = vrot.slane %v2295, 4
      %v2298 = vor.u32 %v2294, %v2297
      %v2300 = vshrl.u32 %v996, 16
      %v2302 = vrot.slane %v2300, 3
      %v2303 = vshll.u32 %v996, 16
      %v2305 = vrot.slane %v2303, 4
      %v2306 = vor.u32 %v2302, %v2305
      %v2307 = vsel %vm1245, %v2298, %v2306
      %v2309 = vshrl.u32 %v1086, 16
      %v2311 = vrot.slane %v2309, 3
      %v2312 = vshll.u32 %v1086, 16
      %v2314 = vrot.slane %v2312, 4
      %v2315 = vor.u32 %v2311, %v2314
      %v2316 = vsel %vm1245, %v2315, %v2315
      %v2318 = vshrl.u32 %v1145, 16
      %v2320 = vrot.slane %v2318, 3
      %v2321 = vshll.u32 %v1145, 16
      %v2323 = vrot.slane %v2321, 4
      %v2324 = vor.u32 %v2320, %v2323
      %v2326 = vshrl.u32 %v1147, 16
      %v2328 = vrot.slane %v2326, 3
      %v2329 = vshll.u32 %v1147, 16
      %v2331 = vrot.slane %v2329, 4
      %v2332 = vor.u32 %v2328, %v2331
      %v2333 = vsel %vm1245, %v2324, %v2332
      %v2385 = vunpack.c.l.b16 %v2243
      %v2386 = vunpack.c.l.b16 %v2244
      %v2387 = vunpack.c.l.b16 %v2245
      %v2388 = vunpack.c.l.b16 %v2246
      %v2389 = vunpack.c.l.b16 %v2247
      %v2390 = vunpack.c.l.b16 %v2248
      %v2391 = vunpack.c.l.b16 %v2249
      %v2392 = vunpack.c.l.b16 %v2250
      %v2393 = vunpack.c.l.b16 %v2251
      %v2394 = vunpack.c.l.b16 %v2252
      %v2395 = vunpack.c.l.b16 %v2253
      %v2396 = vunpack.c.l.b16 %v2254
      %v2397 = vunpack.c.l.b16 %v2255
      %v2398 = vunpack.c.l.b16 %v2256
      %v2399 = vunpack.c.l.b16 %v2257
      %v2400 = vunpack.c.l.b16 %v2258
      %v2401 = vunpack.c.l.b16 %v2259
      %v2402 = vunpack.c.l.b16 %v2260
      %v2403 = vunpack.c.l.b16 %v2261
      %v2404 = vunpack.c.l.b16 %v2262
      %v2405 = vunpack.c.l.b16 %v2263
      %v2406 = vunpack.c.l.b16 %v2264
      %v2407 = vunpack.c.l.b16 %v2265
      %v2408 = vunpack.c.l.b16 %v2266
      %v2409 = vunpack.c.l.b16 %v2267
      %v2410 = vunpack.c.l.b16 %v2268
      %v2411 = vunpack.c.l.b16 %v2269
      %v2412 = vunpack.c.l.b16 %v2270
      %v2413 = vunpack.c.l.b16 %v2271
      %v2414 = vunpack.c.l.b16 %v2272
      %v2415 = vunpack.c.l.b16 %v2273
      %v2416 = vunpack.c.l.b16 %v2274
      %v2417 = vunpack.c.l.b16 %v2275
      %v2418 = vunpack.c.l.b16 %v2276
      %v2419 = vunpack.c.l.b16 %v2277
      %v2420 = vunpack.c.l.b16 %v2278
      %v2421 = vunpack.c.l.b16 %v2279
      %v2422 = vunpack.c.l.b16 %v2280
      %v2423 = vunpack.c.l.b16 %v2281
      %v2424 = vunpack.c.l.b16 %v2282
      %v2425 = vunpack.c.l.b16 %v2283
      %v2426 = vunpack.c.l.b16 %v2284
      %v2427 = vunpack.c.l.b16 %v2285
      %v2428 = vunpack.c.l.b16 %v2286
      %v2429 = vunpack.c.l.b16 %v2287
      %v2430 = vunpack.c.l.b16 %v2288
      %v2431 = vunpack.c.l.b16 %v2289
      %v2432 = vunpack.c.l.b16 %v2290
      %v2433 = vpack.c.b16 %v2386, %v2385
      %v2434 = vpack.c.b16 %v2388, %v2387
      %v2435 = vpack.c.b16 %v2390, %v2389
      %v2436 = vpack.c.b16 %v2392, %v2391
      %v2437 = vpack.c.b16 %v2394, %v2393
      %v2438 = vpack.c.b16 %v2396, %v2395
      %v2439 = vpack.c.b16 %v2398, %v2397
      %v2440 = vpack.c.b16 %v2400, %v2399
      %v2441 = vpack.c.b16 %v2402, %v2401
      %v2442 = vpack.c.b16 %v2404, %v2403
      %v2443 = vpack.c.b16 %v2406, %v2405
      %v2444 = vpack.c.b16 %v2408, %v2407
      %v2445 = vpack.c.b16 %v2410, %v2409
      %v2446 = vpack.c.b16 %v2412, %v2411
      %v2447 = vpack.c.b16 %v2414, %v2413
      %v2448 = vpack.c.b16 %v2416, %v2415
      %v2449 = vpack.c.b16 %v2418, %v2417
      %v2450 = vpack.c.b16 %v2420, %v2419
      %v2451 = vpack.c.b16 %v2422, %v2421
      %v2452 = vpack.c.b16 %v2424, %v2423
      %v2453 = vpack.c.b16 %v2426, %v2425
      %v2454 = vpack.c.b16 %v2428, %v2427
      %v2455 = vpack.c.b16 %v2430, %v2429
      %v2456 = vpack.c.b16 %v2432, %v2431
      %2481 = vmatpush.bf16.msra.mxu0 %v2440
      %2482 = vmatpush.bf16.msra.mxu0 %v2439
      %2483 = vmatpush.bf16.msra.mxu0 %v2438
      %2484 = vmatpush.bf16.msra.mxu0 %v2437
      %2485 = vmatpush.bf16.msra.mxu0 %v2436
      %2486 = vmatpush.bf16.msra.mxu0 %v2435
      %2487 = vmatpush.bf16.msra.mxu0 %v2434
      %2488 = vmatpush.bf16.msra.mxu0 %v2433
      %2489 = vmatmul.bf16.gmra.mxu0 %v1305
      %v2490 = vpop.f32.mrf.mxu0
      %v2491 = vadd.f32 0.0, %v2490
      %v2492 = vpop.f32.mrf.mxu0
      %v2493 = vadd.f32 0.0, %v2492
      %2494 = vmatmul.bf16.gmra.mxu0 %v1348
      %v2495 = vpop.f32.mrf.mxu0
      %v2496 = vadd.f32 0.0, %v2495
      %v2497 = vpop.f32.mrf.mxu0
      %v2498 = vadd.f32 0.0, %v2497
      %2499 = vmatmul.bf16.gmra.mxu0 %v1391
      %v2500 = vpop.f32.mrf.mxu0
      %v2501 = vadd.f32 0.0, %v2500
      %v2502 = vpop.f32.mrf.mxu0
      %v2503 = vadd.f32 0.0, %v2502
      %2504 = vmatmul.bf16.gmra.mxu0 %v1434
      %v2505 = vpop.f32.mrf.mxu0
      %v2506 = vadd.f32 0.0, %v2505
      %v2507 = vpop.f32.mrf.mxu0
      %v2508 = vadd.f32 0.0, %v2507
      %2509 = vmatmul.bf16.gmra.mxu0 %v1477
      %v2510 = vpop.f32.mrf.mxu0
      %v2511 = vadd.f32 0.0, %v2510
      %v2512 = vpop.f32.mrf.mxu0
      %v2513 = vadd.f32 0.0, %v2512
      %2514 = vmatmul.bf16.gmra.mxu0 %v1520
      %v2515 = vpop.f32.mrf.mxu0
      %v2516 = vadd.f32 0.0, %v2515
      %v2517 = vpop.f32.mrf.mxu0
      %v2518 = vadd.f32 0.0, %v2517
      %2519 = vmatmul.bf16.gmra.mxu0 %v1563
      %v2520 = vpop.f32.mrf.mxu0
      %v2521 = vadd.f32 0.0, %v2520
      %v2522 = vpop.f32.mrf.mxu0
      %v2523 = vadd.f32 0.0, %v2522
      %2524 = vmatmul.bf16.gmra.mxu0 %v2307
      %v2525 = vpop.f32.mrf.mxu0
      %v2526 = vadd.f32 0.0, %v2525
      %v2527 = vpop.f32.mrf.mxu0
      %v2528 = vadd.f32 0.0, %v2527
      %2529 = vdwg.mxu0
      %2530 = vmatpush.bf16.msra.mxu0 %v2448
      %2531 = vmatpush.bf16.msra.mxu0 %v2447
      %2532 = vmatpush.bf16.msra.mxu0 %v2446
      %2533 = vmatpush.bf16.msra.mxu0 %v2445
      %2534 = vmatpush.bf16.msra.mxu0 %v2444
      %2535 = vmatpush.bf16.msra.mxu0 %v2443
      %2536 = vmatpush.bf16.msra.mxu0 %v2442
      %2537 = vmatpush.bf16.msra.mxu0 %v2441
      %2538 = vmatmul.bf16.gmra.mxu0 %v1314
      %v2539 = vpop.f32.mrf.mxu0
      %v2540 = vadd.f32 %v2491, %v2539
      %v2541 = vpop.f32.mrf.mxu0
      %v2542 = vadd.f32 %v2493, %v2541
      %2543 = vmatmul.bf16.gmra.mxu0 %v1357
      %v2544 = vpop.f32.mrf.mxu0
      %v2545 = vadd.f32 %v2496, %v2544
      %v2546 = vpop.f32.mrf.mxu0
      %v2547 = vadd.f32 %v2498, %v2546
      %2548 = vmatmul.bf16.gmra.mxu0 %v1400
      %v2549 = vpop.f32.mrf.mxu0
      %v2550 = vadd.f32 %v2501, %v2549
      %v2551 = vpop.f32.mrf.mxu0
      %v2552 = vadd.f32 %v2503, %v2551
      %2553 = vmatmul.bf16.gmra.mxu0 %v1443
      %v2554 = vpop.f32.mrf.mxu0
      %v2555 = vadd.f32 %v2506, %v2554
      %v2556 = vpop.f32.mrf.mxu0
      %v2557 = vadd.f32 %v2508, %v2556
      %2558 = vmatmul.bf16.gmra.mxu0 %v1486
      %v2559 = vpop.f32.mrf.mxu0
      %v2560 = vadd.f32 %v2511, %v2559
      %v2561 = vpop.f32.mrf.mxu0
      %v2562 = vadd.f32 %v2513, %v2561
      %2563 = vmatmul.bf16.gmra.mxu0 %v1529
      %v2564 = vpop.f32.mrf.mxu0
      %v2565 = vadd.f32 %v2516, %v2564
      %v2566 = vpop.f32.mrf.mxu0
      %v2567 = vadd.f32 %v2518, %v2566
      %2568 = vmatmul.bf16.gmra.mxu0 %v1572
      %v2569 = vpop.f32.mrf.mxu0
      %v2570 = vadd.f32 %v2521, %v2569
      %v2571 = vpop.f32.mrf.mxu0
      %v2572 = vadd.f32 %v2523, %v2571
      %2573 = vmatmul.bf16.gmra.mxu0 %v2316
      %v2574 = vpop.f32.mrf.mxu0
      %v2575 = vadd.f32 %v2526, %v2574
      %v2576 = vpop.f32.mrf.mxu0
      %v2577 = vadd.f32 %v2528, %v2576
      %2578 = vdwg.mxu0
      %2579 = vmatpush.bf16.msra.mxu0 %v2456
      %2580 = vmatpush.bf16.msra.mxu0 %v2455
      %2581 = vmatpush.bf16.msra.mxu0 %v2454
      %2582 = vmatpush.bf16.msra.mxu0 %v2453
      %2583 = vmatpush.bf16.msra.mxu0 %v2452
      %2584 = vmatpush.bf16.msra.mxu0 %v2451
      %2585 = vmatpush.bf16.msra.mxu0 %v2450
      %2586 = vmatpush.bf16.msra.mxu0 %v2449
      %2587 = vmatmul.bf16.gmra.mxu0 %v1331
      %v2588 = vpop.f32.mrf.mxu0
      %v2589 = vadd.f32 %v2540, %v2588
      %v2590 = vpop.f32.mrf.mxu0
      %v2591 = vadd.f32 %v2542, %v2590
      %2592 = vmatmul.bf16.gmra.mxu0 %v1374
      %v2593 = vpop.f32.mrf.mxu0
      %v2594 = vadd.f32 %v2545, %v2593
      %v2595 = vpop.f32.mrf.mxu0
      %v2596 = vadd.f32 %v2547, %v2595
      %2597 = vmatmul.bf16.gmra.mxu0 %v1417
      %v2598 = vpop.f32.mrf.mxu0
      %v2599 = vadd.f32 %v2550, %v2598
      %v2600 = vpop.f32.mrf.mxu0
      %v2601 = vadd.f32 %v2552, %v2600
      %2602 = vmatmul.bf16.gmra.mxu0 %v1460
      %v2603 = vpop.f32.mrf.mxu0
      %v2604 = vadd.f32 %v2555, %v2603
      %v2605 = vpop.f32.mrf.mxu0
      %v2606 = vadd.f32 %v2557, %v2605
      %2607 = vmatmul.bf16.gmra.mxu0 %v1503
      %v2608 = vpop.f32.mrf.mxu0
      %v2609 = vadd.f32 %v2560, %v2608
      %v2610 = vpop.f32.mrf.mxu0
      %v2611 = vadd.f32 %v2562, %v2610
      %2612 = vmatmul.bf16.gmra.mxu0 %v1546
      %v2613 = vpop.f32.mrf.mxu0
      %v2614 = vadd.f32 %v2565, %v2613
      %v2615 = vpop.f32.mrf.mxu0
      %v2616 = vadd.f32 %v2567, %v2615
      %2617 = vmatmul.bf16.gmra.mxu0 %v1589
      %v2618 = vpop.f32.mrf.mxu0
      %v2619 = vadd.f32 %v2570, %v2618
      %v2620 = vpop.f32.mrf.mxu0
      %v2621 = vadd.f32 %v2572, %v2620
      %2622 = vmatmul.bf16.gmra.mxu0 %v2333
      %v2623 = vpop.f32.mrf.mxu0
      %v2624 = vadd.f32 %v2575, %v2623
      %v2625 = vpop.f32.mrf.mxu0
      %v2626 = vadd.f32 %v2577, %v2625
      %2627 = vdwg.mxu0
      %v2628 = vadd.f32 %v2203, %v2589
      %v2629 = vadd.f32 %v2205, %v2591
      %v2630 = vadd.f32 %v2208, %v2594
      %v2631 = vadd.f32 %v2210, %v2596
      %v2632 = vadd.f32 %v2213, %v2599
      %v2633 = vadd.f32 %v2215, %v2601
      %v2634 = vadd.f32 %v2218, %v2604
      %v2635 = vadd.f32 %v2220, %v2606
      %v2636 = vadd.f32 %v2223, %v2609
      %v2637 = vadd.f32 %v2225, %v2611
      %v2638 = vadd.f32 %v2228, %v2614
      %v2639 = vadd.f32 %v2230, %v2616
      %v2640 = vadd.f32 %v2233, %v2619
      %v2641 = vadd.f32 %v2235, %v2621
      %v2642 = vadd.f32 %v2238, %v2624
      %v2643 = vadd.f32 %v2240, %v2626
      %v2644 = vld [vmem:[%s4] sm:$0x1]
      %v2646 = vperm.slane %v2644, 0
      %v2648 = vadd.f32 %v2628, %v2646
      %v2649 = vadd.f32 %v2629, %v2646
      %v2650 = vadd.f32 %v2630, %v2646
      %v2651 = vadd.f32 %v2631, %v2646
      %v2652 = vadd.f32 %v2632, %v2646
      %v2653 = vadd.f32 %v2633, %v2646
      %v2654 = vadd.f32 %v2634, %v2646
      %v2655 = vadd.f32 %v2635, %v2646
      %v2656 = vadd.f32 %v2636, %v2646
      %v2657 = vadd.f32 %v2637, %v2646
      %v2658 = vadd.f32 %v2638, %v2646
      %v2659 = vadd.f32 %v2639, %v2646
      %v2660 = vadd.f32 %v2640, %v2646
      %v2661 = vadd.f32 %v2641, %v2646
      %v2662 = vadd.f32 %v2642, %v2646
      %v2663 = vadd.f32 %v2643, %v2646
      %v2664 = vmax.f32 %v2648, 0.0
      %v2665 = vmax.f32 %v2649, 0.0
      %v2666 = vmax.f32 %v2650, 0.0
      %v2667 = vmax.f32 %v2651, 0.0
      %v2668 = vmax.f32 %v2652, 0.0
      %v2669 = vmax.f32 %v2653, 0.0
      %v2670 = vmax.f32 %v2654, 0.0
      %v2671 = vmax.f32 %v2655, 0.0
      %v2672 = vmax.f32 %v2656, 0.0
      %v2673 = vmax.f32 %v2657, 0.0
      %v2674 = vmax.f32 %v2658, 0.0
      %v2675 = vmax.f32 %v2659, 0.0
      %v2676 = vmax.f32 %v2660, 0.0
      %v2677 = vmax.f32 %v2661, 0.0
      %v2678 = vmax.f32 %v2662, 0.0
      %v2679 = vmax.f32 %v2663, 0.0
      %v2680 = vpack.c.bf16 %v2664, %v2664
      %v2681 = vpack.c.bf16 %v2665, %v2665
      %v2682 = vpack.c.bf16 %v2666, %v2666
      %v2683 = vpack.c.bf16 %v2667, %v2667
      %v2684 = vpack.c.bf16 %v2668, %v2668
      %v2685 = vpack.c.bf16 %v2669, %v2669
      %v2686 = vpack.c.bf16 %v2670, %v2670
      %v2687 = vpack.c.bf16 %v2671, %v2671
      %v2688 = vpack.c.bf16 %v2672, %v2672
      %v2689 = vpack.c.bf16 %v2673, %v2673
      %v2690 = vpack.c.bf16 %v2674, %v2674
      %v2691 = vpack.c.bf16 %v2675, %v2675
      %v2692 = vpack.c.bf16 %v2676, %v2676
      %v2693 = vpack.c.bf16 %v2677, %v2677
      %v2694 = vpack.c.bf16 %v2678, %v2678
      %v2695 = vpack.c.bf16 %v2679, %v2679
      %2696 = vst [vmem:[%s202] sm:$0xf] %v2680
      %2697 = vst [vmem:[%s202 + $0x4] sm:$0xf] %v2681
      %2698 = vst [vmem:[%s202 + $0x8] sm:$0xf] %v2682
      %2699 = vst [vmem:[%s202 + $0xc] sm:$0xf] %v2683
      %2700 = vst [vmem:[%s202 + $0x10] sm:$0xf] %v2684
      %2701 = vst [vmem:[%s202 + $0x14] sm:$0xf] %v2685
      %2702 = vst [vmem:[%s202 + $0x18] sm:$0xf] %v2686
      %2703 = vst [vmem:[%s202 + $0x1c] sm:$0xf] %v2687
      %2704 = vst [vmem:[%s202 + $0x20] sm:$0xf] %v2688
      %2705 = vst [vmem:[%s202 + $0x24] sm:$0xf] %v2689
      %2706 = vst [vmem:[%s202 + $0x28] sm:$0xf] %v2690
      %2707 = vst [vmem:[%s202 + $0x2c] sm:$0xf] %v2691
      %2708 = vst [vmem:[%s202 + $0x30] sm:$0xf] %v2692
      %2709 = vst [vmem:[%s202 + $0x34] sm:$0xf] %v2693
      %2710 = vst [vmem:[%s202 + $0x38] sm:$0xf] %v2694
      %2711 = vst [vmem:[%s202 + $0x3c] sm:$0xf] %v2695
      %s2712 = smul.u32 8, %s21
      %p2713 = scmp.lt.s32.totalorder %s20, 1
      %s2714 = scalar_select %p2713, %s20, 1
      %p2715 = scmp.lt.s32.totalorder %s2712, 23
      %s2716 = scalar_select %p2715, %s2712, 23
      %s2717 = smul.addr %s2716, 2
      %s2718 = smul.addr %s2714, 48
      %s2719 = sadd.s32 %s2717, %s2718
      %s2720 = smul.addr %s2719, 4
      %s2721 = scalar_lea.vmem %s5, %s2720
      // Predicated region
      $region103: #{daspp_conv_branch.1} parent=35 // pred_check
        %p2722 = pneg %p132
      $region104: #{daspp_conv_branch.1} parent=35 // pred_check_branch
        %2724 = sbr.rel (%p2722) target = $region106
      $region105: #{daspp_conv_branch.1} parent=35 // pred_region
        %s2725 = smul.u32 8, %s21
      $region106: #{daspp_conv_branch.1} parent=35 // pred_fallthru
        _
    $region36: #{daspp_conv_branch.1} parent=5 // pred_fallthru
      _
    %p2726 = scmp.le.s32.totalorder 2, %s11
    // Predicated region
    $region107: #{daspp_conv_branch.1} parent=5 // pred_check
      %p2727 = pneg %p2726
    $region108: #{daspp_conv_branch.1} parent=5 // pred_check_branch
      %2729 = sbr.rel (%p2727) target = $region110
    $region109: #{daspp_conv_branch.1} parent=5 // pred_region
      %s2730 = ssub.s32 %s11, 2
      // Predicated region
      $region111: #{daspp_conv_branch.1} parent=109 // pred_check
        %p2731 = pneg %p138
      $region112: #{daspp_conv_branch.1} parent=109 // pred_check_branch
        %2733 = sbr.rel (%p2731) target = $region114
      $region113: #{daspp_conv_branch.1} parent=109 // pred_region
        %s2734 = smul.u32 8, %s23
        %p2735 = scmp.lt.s32.totalorder %s22, 1
        %s2736 = scalar_select %p2735, %s22, 1
        %p2737 = scmp.lt.s32.totalorder %s2734, 23
        %s2738 = scalar_select %p2737, %s2734, 23
        %s2739 = smul.addr %s2738, 2
        %s2740 = smul.addr %s2736, 48
        %s2741 = sadd.s32 %s2739, %s2740
        %s2742 = smul.addr %s2741, 4
        %s2743 = scalar_lea.vmem %s5, %s2742
      $region114: #{daspp_conv_branch.1} parent=109 // pred_fallthru
        _
    $region110: #{daspp_conv_branch.1} parent=5 // pred_fallthru
      _
  $region6: #{daspp_conv_branch.1} parent=0 // loop_footer
    %s15 = sadd.s32 1, %s11
  $region7: #{daspp_conv_branch.1} parent=0 // loop_footer_branch
    %10 = sbr.rel target = $region3
  $region8: #{daspp_conv_branch.1} parent=0 // loop_exit
    _
  %2744 = vsyncmov [#allocation3]
  %s2745 = vpop.sfrf %2744
  %p2746 = scmp.eq.s32.totalorder %s2745, 0
  %p2747 = pneg %p2746
  %2749 = shalt.err (%p2747)
  %s2750 = scalar_lea.sflag [#allocation3], 1
  %2751 = vsyncmov %s2750
  %s2752 = vpop.sfrf %2751
  %p2753 = scmp.eq.s32.totalorder %s2752, 0
  %p2754 = pneg %p2753
  %2756 = shalt.err (%p2754)

</llo_original>
